<compile_context>
chip_gen: v6e
topology: v6e:2x2x1
jax: 0.10.0
libtpu: 0.0.40
codegen_flags: <defaults>
</compile_context>

<pallas_src>
import jax
import jax.numpy as jnp
from jax.experimental import pallas as pl
from jax.experimental.pallas import tpu as pltpu

LANE = 128
MAX_BLOCK_ROWS = 8192  # 8192 x 128 x 4B = 4 MiB per f32 tile


def _cdiv(a, b):
    return -(-a // b)


def _round_up(x, m):
    return _cdiv(x, m) * m


def _sublane(dtype):
    # Native sublane packing: 8 for 32-bit, 16 for bf16/fp16, 32 for 8-bit.
    return 8 * (4 // jnp.dtype(dtype).itemsize)


# --------------------------------------------------------------------------
# Kernel: streaming lerp over one (block_rows, 128) tile.
# --------------------------------------------------------------------------
def _ema_kernel(lr_ref, p_ref, ema_ref, out_ref):
    # lr_ref: (2,) f32 in SMEM = [1 - lr, lr]  (1 - lr hoisted host-side).
    one_minus_lr = lr_ref[0]
    lr = lr_ref[1]
    p = p_ref[...].astype(jnp.float32)
    e = ema_ref[...].astype(jnp.float32)
    out_ref[...] = (one_minus_lr * p + lr * e).astype(out_ref.dtype)


def _ema_update_2d(lr_arr, p2d, ema2d, block_rows):
    """One pallas_call over a (rows, 128) lane-dense slab; rows % block_rows == 0."""
    rows = p2d.shape[0]
    grid = (rows // block_rows,)
    return pl.pallas_call(
        _ema_kernel,
        out_shape=jax.ShapeDtypeStruct(ema2d.shape, ema2d.dtype),
        grid=grid,
        in_specs=[
            pl.BlockSpec(memory_space=pltpu.MemorySpace.SMEM),        # [1-lr, lr]
            pl.BlockSpec((block_rows, LANE), lambda i: (i, 0)),       # model params
            pl.BlockSpec((block_rows, LANE), lambda i: (i, 0)),       # ema slab
        ],
        out_specs=pl.BlockSpec((block_rows, LANE), lambda i: (i, 0)),
        # ema slab (input index 2) aliased to the output -> in-place update.
        input_output_aliases={2: 0},
        compiler_params=pltpu.CompilerParams(
            dimension_semantics=("parallel",),
            vmem_limit_bytes=48 * 1024 * 1024,
        ),
    )(lr_arr, p2d, ema2d)


# --------------------------------------------------------------------------
# Layout: pack all params of one (model_dtype, ema_dtype) group into a slab.
# --------------------------------------------------------------------------
def _build_layout(model_params, ema_params):
    groups = {}
    for k in model_params:
        gk = (jnp.dtype(model_params[k].dtype), jnp.dtype(ema_params[k].dtype))
        groups.setdefault(gk, []).append(k)

    layout = []
    for (p_dt, e_dt), keys in groups.items():
        sizes = [int(model_params[k].size) for k in keys]
        shapes = [tuple(model_params[k].shape) for k in keys]
        n = sum(sizes)
        sub = max(_sublane(p_dt), _sublane(e_dt))          # sublane alignment
        rows_raw = _cdiv(n, LANE)
        n_blocks = _cdiv(_round_up(rows_raw, sub), MAX_BLOCK_ROWS)
        block_rows = _round_up(_cdiv(rows_raw, n_blocks), sub)
        rows = _round_up(rows_raw, block_rows)
        layout.append(dict(keys=keys, p_dtype=p_dt, e_dtype=e_dt,
                           sizes=sizes, shapes=shapes,
                           block_rows=block_rows, rows=rows,
                           pad=rows * LANE - n))
    return layout


def _pack_slab(leaves, dtype, rows, pad):
    """Ravel + concat (pad folded into the concat) + reshape to (rows, 128)."""
    chunks = [x.reshape(-1).astype(dtype) for x in leaves]   # astype is a no-op
    if pad:
        chunks.append(jnp.zeros((pad,), dtype=dtype))
    return jnp.concatenate(chunks).reshape(rows, LANE)


def _make_step_fn(layout):
    """jit-compiled step: pack p -> fused kernel per group -> slice out leaves."""
    def step(lr_arr, model_params, ema_slabs):
        new_slabs = []
        new_leaves = {}
        for g, e_slab in zip(layout, ema_slabs):
            p_slab = _pack_slab([model_params[k] for k in g["keys"]],
                                g["p_dtype"], g["rows"], g["pad"])
            out2d = _ema_update_2d(lr_arr, p_slab, e_slab, g["block_rows"])
            new_slabs.append(out2d)
            out_flat = out2d.reshape(-1)
            off = 0
            for k, sz, shp in zip(g["keys"], g["sizes"], g["shapes"]):
                new_leaves[k] = out_flat[off:off + sz].reshape(shp)
                off += sz
        return new_slabs, new_leaves

    # donate previous EMA slabs -> their HBM buffers are reused for new slabs.
    return jax.jit(step, donate_argnums=2)


# --------------------------------------------------------------------------
# Module
# --------------------------------------------------------------------------
class EMA:
    """JAX/Pallas port of the PyTorch EMA module (iter counter kept Python-side).

    EMA state lives in packed per-dtype slabs between calls; `ema_model_params`
    is only used to seed the state on the first call (matches the usual usage
    pattern of feeding the previous return value back in).
    """

    def __init__(self, warmup_iter=1000, momentum=0.999):
        self.momentum = momentum
        self.iter_cnt = 0
        self.warmup_iter = warmup_iter
        self._layout = None
        self._slabs = None
        self._step_fn = None

    def compute_lr(self):
        if self.iter_cnt > self.warmup_iter:
            return self.momentum
        return (self.momentum * (self.warmup_iter - self.iter_cnt)
                / self.warmup_iter + (1 - self.momentum))

    def _init_state(self, model_params, ema_model_params):
        self._layout = _build_layout(model_params, ema_model_params)
        self._slabs = [
            _pack_slab([ema_model_params[k] for k in g["keys"]],
                       g["e_dtype"], g["rows"], g["pad"])
            for g in self._layout
        ]
        self._step_fn = _make_step_fn(self._layout)

    def __call__(self, model_params, ema_model_params):
        if self._slabs is None:
            self._init_state(model_params, ema_model_params)
        self.iter_cnt += 1
        lr = self.compute_lr()
        lr_arr = jnp.asarray([1.0 - lr, lr], dtype=jnp.float32)
        new_slabs, new_leaves = self._step_fn(lr_arr, model_params, self._slabs)
        self._slabs = new_slabs
        # Return in the caller's key order (cosmetic).
        return {k: new_leaves[k] for k in model_params}


if __name__ == "__main__":
    key = jax.random.PRNGKey(0)
    ks = jax.random.split(key, 10)

    # Deterministic synthetic "model" / "ema model" dicts: mixed sizes (tiny
    # conv/bias, a larger embedding) and a bf16 param to exercise native-dtype
    # EMA state handling.
    model_params = {
        "conv.weight": jax.random.normal(ks[0], (4, 4, 3, 3), dtype=jnp.float32),
        "fc.weight": jax.random.normal(ks[1], (32, 64), dtype=jnp.float32),
        "fc.bias": jax.random.normal(ks[2], (32,), dtype=jnp.float32),
        "embed.weight": jax.random.normal(ks[3], (256, 1024), dtype=jnp.float32),
        "head.weight": jax.random.normal(ks[4], (64, 32),
                                         dtype=jnp.float32).astype(jnp.bfloat16),
    }
    ema_model_params = {
        "conv.weight": jax.random.normal(ks[5], (4, 4, 3, 3), dtype=jnp.float32),
        "fc.weight": jax.random.normal(ks[6], (32, 64), dtype=jnp.float32),
        "fc.bias": jax.random.normal(ks[7], (32,), dtype=jnp.float32),
        "embed.weight": jax.random.normal(ks[8], (256, 1024), dtype=jnp.float32),
        "head.weight": jax.random.normal(ks[9], (64, 32),
                                         dtype=jnp.float32).astype(jnp.bfloat16),
    }

    ema = EMA(warmup_iter=1000, momentum=0.999)

    # Step 1 (also builds the slab layout / seeds the EMA state).
    out1 = ema(model_params, ema_model_params)
    out1 = jax.block_until_ready(out1)

    # Step 2 exercises the persisted-slab fast path (no EMA re-pack).
    out2 = ema(model_params, out1)
    out2 = jax.block_until_ready(out2)

    # Reference check (pure JAX, f32 accumulate, cast to the EMA dtype between
    # steps exactly like the kernel does).
    def ref_lr(it):
        return 0.999 * (1000 - it) / 1000 + (1 - 0.999)

    lr1, lr2 = ref_lr(1), ref_lr(2)
    for k in model_params:
        p = model_params[k].astype(jnp.float32)
        e0 = ema_model_params[k].astype(jnp.float32)
        dt = ema_model_params[k].dtype
        exp1 = ((1.0 - lr1) * p + lr1 * e0).astype(dt)
        exp2 = ((1.0 - lr2) * p + lr2 * exp1.astype(jnp.float32)).astype(dt)
        tol = 1e-5 if dt == jnp.float32 else 1e-2
        assert out1[k].shape == model_params[k].shape, k
        assert out1[k].dtype == dt, k
        assert jnp.allclose(out1[k].astype(jnp.float32),
                            exp1.astype(jnp.float32), atol=tol, rtol=tol), k
        assert jnp.allclose(out2[k].astype(jnp.float32),
                            exp2.astype(jnp.float32), atol=tol, rtol=tol), k

    print("KERNEL_OK")
</pallas_src>

<mosaic_0001>
module attributes {stable_mosaic.version = 11 : i64} {
  func.func @_ema_kernel(%arg0: i32, %arg1: memref<2xf32, #tpu.memory_space<smem>>, %arg2: memref<2072x128xf32, #tpu.memory_space<vmem>>, %arg3: memref<2072x128xf32, #tpu.memory_space<vmem>>, %arg4: memref<2072x128xf32, #tpu.memory_space<vmem>>) attributes {dimension_semantics = [#tpu.dimension_semantics<parallel>], iteration_bounds = array<i64: 1>, scalar_prefetch = 0 : i64, scratch_operands = 0 : i64, tpu.core_type = #tpu.core_type<tc>, window_params = [{transform_indices = @transform_0, window_bounds = array<i64: 2>}, {transform_indices = @transform_1, window_bounds = array<i64: 2072, 128>}, {transform_indices = @transform_2, window_bounds = array<i64: 2072, 128>}, {transform_indices = @transform_3, window_bounds = array<i64: 2072, 128>}]} {
    %c0 = arith.constant 0 : index
    %0 = memref.load %arg1[%c0] : memref<2xf32, #tpu.memory_space<smem>>
    %c1 = arith.constant 1 : index
    %1 = memref.load %arg1[%c1] : memref<2xf32, #tpu.memory_space<smem>>
    %c0_0 = arith.constant 0 : index
    %c0_1 = arith.constant 0 : index
    %2 = vector.load %arg2[%c0_0, %c0_1] : memref<2072x128xf32, #tpu.memory_space<vmem>>, vector<2072x128xf32>
    %c0_2 = arith.constant 0 : index
    %c0_3 = arith.constant 0 : index
    %3 = vector.load %arg3[%c0_2, %c0_3] : memref<2072x128xf32, #tpu.memory_space<vmem>>, vector<2072x128xf32>
    %4 = vector.broadcast %0 : f32 to vector<2072x128xf32>
    %5 = arith.mulf %4, %2 : vector<2072x128xf32>
    %6 = vector.broadcast %1 : f32 to vector<2072x128xf32>
    %7 = arith.mulf %6, %3 : vector<2072x128xf32>
    %8 = arith.addf %5, %7 : vector<2072x128xf32>
    %c0_4 = arith.constant 0 : index
    %c0_5 = arith.constant 0 : index
    %9 = vector.load %arg4[%c0_4, %c0_5] : memref<2072x128xf32, #tpu.memory_space<vmem>>, vector<2072x128xf32>
    tpu.vector_store %arg4[%c0_4, %c0_5], %8 {strides = array<i32>} : memref<2072x128xf32, #tpu.memory_space<vmem>>, vector<2072x128xf32>,
    return
  }
  func.func @transform_0(%arg0: i32) -> i32 {
    %c0_i32 = arith.constant 0 : i32
    %c0_i32_0 = arith.constant 0 : i32
    return %c0_i32 : i32
  }
  func.func @transform_1(%arg0: i32) -> (i32, i32) {
    %c0_i32 = arith.constant 0 : i32
    %c0_i32_0 = arith.constant 0 : i32
    return %arg0, %c0_i32 : i32, i32
  }
  func.func @transform_2(%arg0: i32) -> (i32, i32) {
    %c0_i32 = arith.constant 0 : i32
    %c0_i32_0 = arith.constant 0 : i32
    return %arg0, %c0_i32 : i32, i32
  }
  func.func @transform_3(%arg0: i32) -> (i32, i32) {
    %c0_i32 = arith.constant 0 : i32
    %c0_i32_0 = arith.constant 0 : i32
    return %arg0, %c0_i32 : i32, i32
  }
}

module attributes {stable_mosaic.version = 11 : i64} {
  func.func @_ema_kernel(%arg0: i32, %arg1: memref<2xf32, #tpu.memory_space<smem>>, %arg2: memref<16x128xbf16, #tpu.memory_space<vmem>>, %arg3: memref<16x128xbf16, #tpu.memory_space<vmem>>, %arg4: memref<16x128xbf16, #tpu.memory_space<vmem>>) attributes {dimension_semantics = [#tpu.dimension_semantics<parallel>], iteration_bounds = array<i64: 1>, scalar_prefetch = 0 : i64, scratch_operands = 0 : i64, tpu.core_type = #tpu.core_type<tc>, window_params = [{transform_indices = @transform_0, window_bounds = array<i64: 2>}, {transform_indices = @transform_1, window_bounds = array<i64: 16, 128>}, {transform_indices = @transform_2, window_bounds = array<i64: 16, 128>}, {transform_indices = @transform_3, window_bounds = array<i64: 16, 128>}]} {
    %c0 = arith.constant 0 : index
    %0 = memref.load %arg1[%c0] : memref<2xf32, #tpu.memory_space<smem>>
    %c1 = arith.constant 1 : index
    %1 = memref.load %arg1[%c1] : memref<2xf32, #tpu.memory_space<smem>>
    %c0_0 = arith.constant 0 : index
    %c0_1 = arith.constant 0 : index
    %2 = vector.load %arg2[%c0_0, %c0_1] : memref<16x128xbf16, #tpu.memory_space<vmem>>, vector<16x128xbf16>
    %3 = arith.extf %2 : vector<16x128xbf16> to vector<16x128xf32>
    %c0_2 = arith.constant 0 : index
    %c0_3 = arith.constant 0 : index
    %4 = vector.load %arg3[%c0_2, %c0_3] : memref<16x128xbf16, #tpu.memory_space<vmem>>, vector<16x128xbf16>
    %5 = arith.extf %4 : vector<16x128xbf16> to vector<16x128xf32>
    %6 = vector.broadcast %0 : f32 to vector<16x128xf32>
    %7 = arith.mulf %6, %3 : vector<16x128xf32>
    %8 = vector.broadcast %1 : f32 to vector<16x128xf32>
    %9 = arith.mulf %8, %5 : vector<16x128xf32>
    %10 = arith.addf %7, %9 : vector<16x128xf32>
    %11 = arith.truncf %10 : vector<16x128xf32> to vector<16x128xbf16>
    %c0_4 = arith.constant 0 : index
    %c0_5 = arith.constant 0 : index
    %12 = vector.load %arg4[%c0_4, %c0_5] : memref<16x128xbf16, #tpu.memory_space<vmem>>, vector<16x128xbf16>
    tpu.vector_store %arg4[%c0_4, %c0_5], %11 {strides = array<i32>} : memref<16x128xbf16, #tpu.memory_space<vmem>>, vector<16x128xbf16>,
    return
  }
  func.func @transform_0(%arg0: i32) -> i32 {
    %c0_i32 = arith.constant 0 : i32
    %c0_i32_0 = arith.constant 0 : i32
    return %c0_i32 : i32
  }
  func.func @transform_1(%arg0: i32) -> (i32, i32) {
    %c0_i32 = arith.constant 0 : i32
    %c0_i32_0 = arith.constant 0 : i32
    return %arg0, %c0_i32 : i32, i32
  }
  func.func @transform_2(%arg0: i32) -> (i32, i32) {
    %c0_i32 = arith.constant 0 : i32
    %c0_i32_0 = arith.constant 0 : i32
    return %arg0, %c0_i32 : i32, i32
  }
  func.func @transform_3(%arg0: i32) -> (i32, i32) {
    %c0_i32 = arith.constant 0 : i32
    %c0_i32_0 = arith.constant 0 : i32
    return %arg0, %c0_i32 : i32, i32
  }
}

</mosaic_0001>

<llo_original>
// kernel: step.3
$region0: #{step.3}
  #allocation0 [shape = 'u32[]', space=smem, size = 0x4, offset = 0x4, fixed_abs, tag = 'smem constant byte address 0x4 - core index']
  #allocation1 [shape = 'u32[144,128]{1,0:T(1,128)}', space=vmem, size = 0x12000, scoped, tag = 'internal scratch']
  %s0 = inlined_call_operand.vmem [shape: f32[2], index: 0, kind: input, shape index: {}]
  %s1 = inlined_call_operand.vmem [shape: bf16[16,128], index: 1, kind: input, shape index: {}]
  %s2 = inlined_call_operand.vmem [shape: bf16[16,128], index: 2, kind: input, shape index: {}, may-alias: {2,3}]
  %s3 = inlined_call_operand.vmem [shape: bf16[16,128], index: 3, kind: output, shape index: {}, may-alias: {2,3}]
  %s4 = sld [smem:[#allocation0]]
  $region26: #{step.3} parent=0
    _
  %s6 = ssub.s32 1, %s4
  %s7 = scalar_select 0, %s6, %s4
  $region1: #{step.3} parent=0
    #allocation2 [shape = 'u8[512]{0}', space=smem, size = 0x200, scoped, tag = 'input window, operand 0, single buffered']
    #allocation3 [shape = 's32[1]{0}', space=sflag, size = 0x4, scoped, tag = 'scoped memory for step.3']
    %8 = vsyncpa [#allocation3], 0
    // Predicated region
    $region2: #{step.3} parent=1 // pred_check
      _
    $region3: #{step.3} parent=1 // pred_check_branch
      %10 = sbr.rel (0) target = $region5
    $region4: #{step.3} parent=1 // pred_region
      %s12 = ssub.s32 16, 16
      %13 = vsyncadd [#allocation3], %s12
      %s15 = sshll.u32 %s0, 4
      %s16 = int_to_ptr.vmem [resolvable:$true] %s15
      %18 = dma.vmem_to_smem %s16, 16, [#allocation2], [#allocation3]
    $region5: #{step.3} parent=1 // pred_fallthru
      _
    // Predicated region
    $region6: #{step.3} parent=1 // pred_check
      _
    $region7: #{step.3} parent=1 // pred_check_branch
      %20 = sbr.rel (0) target = $region9
    $region8: #{step.3} parent=1 // pred_region
      _
    $region9: #{step.3} parent=1 // pred_fallthru
      _
    // Predicated region
    $region10: #{step.3} parent=1 // pred_check
      _
    $region11: #{step.3} parent=1 // pred_check_branch
      %22 = sbr.rel (0) target = $region13
    $region12: #{step.3} parent=1 // pred_region
      _
    $region13: #{step.3} parent=1 // pred_fallthru
      _
    // Predicated region
    $region14: #{step.3} parent=1 // pred_check
      _
    $region15: #{step.3} parent=1 // pred_check_branch
      %24 = sbr.rel (0) target = $region17
    $region16: #{step.3} parent=1 // pred_region
      %25 = dma.done [#allocation3], 16
    $region17: #{step.3} parent=1 // pred_fallthru
      _
    %26 = sfence
    %s27 = sld [smem:[#allocation2]]
    %s28 = sld [smem:[#allocation2 + $0x1]]
    %v29 = vld [vmem:[%s1] sm:$0xf]
    %v30 = vld [vmem:[%s1 + $0x4] sm:$0xf]
    %v31 = vunpack.c.l.bf16 %v29
    %v32 = vunpack.c.l.bf16 %v30
    %v33 = vld [vmem:[%s2] sm:$0xf]
    %v34 = vld [vmem:[%s2 + $0x4] sm:$0xf]
    %v35 = vunpack.c.l.bf16 %v33
    %v36 = vunpack.c.l.bf16 %v34
    %v37 = vstv %s27
    %v38 = vmul.f32 %v37, %v31
    %v39 = vmul.f32 %v37, %v32
    %v40 = vstv %s28
    %v41 = vmul.f32 %v40, %v35
    %v42 = vmul.f32 %v40, %v36
    %v43 = vadd.f32 %v38, %v41
    %v44 = vadd.f32 %v39, %v42
    %v45 = vpack.c.bf16 %v44, %v43
    %v47 = vunpack.c.l.b16 %v45
    %v48 = vunpack.c.h.b16 %v45
    %v49 = vpack.c.b16 %v47, %v47
    %v50 = vpack.c.b16 %v48, %v48
    %53 = vst [vmem:[%s3] sm:$0xf] %v49
    %54 = vst [vmem:[%s3 + $0x4] sm:$0xf] %v50
    // Predicated region
    $region18: #{step.3} parent=1 // pred_check
      _
    $region19: #{step.3} parent=1 // pred_check_branch
      %56 = sbr.rel (0) target = $region21
    $region20: #{step.3} parent=1 // pred_region
      _
    $region21: #{step.3} parent=1 // pred_fallthru
      _
    // Predicated region
    $region22: #{step.3} parent=1 // pred_check
      _
    $region23: #{step.3} parent=1 // pred_check_branch
      %58 = sbr.rel (0) target = $region25
    $region24: #{step.3} parent=1 // pred_region
      _
    $region25: #{step.3} parent=1 // pred_fallthru
      _
    %59 = vsyncpa [#allocation3], 1

// kernel: step.2
$region0: #{step.2}
  #allocation0 [shape = 'u32[]', space=smem, size = 0x4, offset = 0x4, fixed_abs, tag = 'smem constant byte address 0x4 - core index']
  #allocation1 [shape = 'u32[144,128]{1,0:T(1,128)}', space=vmem, size = 0x12000, scoped, tag = 'internal scratch']
  %s0 = inlined_call_operand.vmem [shape: f32[2], index: 0, kind: input, shape index: {}]
  %s1 = inlined_call_operand.vmem [shape: f32[2072,128], index: 1, kind: input, shape index: {}]
  %s2 = inlined_call_operand.vmem [shape: f32[2072,128], index: 2, kind: input, shape index: {}, may-alias: {2,3}]
  %s3 = inlined_call_operand.vmem [shape: f32[2072,128], index: 3, kind: output, shape index: {}, may-alias: {2,3}]
  %s4 = sld [smem:[#allocation0]]
  $region26: #{step.2} parent=0
    _
  %s6 = ssub.s32 1, %s4
  %s7 = scalar_select 0, %s6, %s4
  $region1: #{step.2} parent=0
    #allocation2 [shape = 'u8[512]{0}', space=smem, size = 0x200, scoped, tag = 'input window, operand 0, single buffered']
    #allocation3 [shape = 's32[1]{0}', space=sflag, size = 0x4, scoped, tag = 'scoped memory for step.2']
    %8 = vsyncpa [#allocation3], 0
    // Predicated region
    $region2: #{step.2} parent=1 // pred_check
      _
    $region3: #{step.2} parent=1 // pred_check_branch
      %10 = sbr.rel (0) target = $region5
    $region4: #{step.2} parent=1 // pred_region
      %s12 = ssub.s32 16, 16
      %13 = vsyncadd [#allocation3], %s12
      %s15 = sshll.u32 %s0, 4
      %s16 = int_to_ptr.vmem [resolvable:$true] %s15
      %18 = dma.vmem_to_smem %s16, 16, [#allocation2], [#allocation3]
    $region5: #{step.2} parent=1 // pred_fallthru
      _
    // Predicated region
    $region6: #{step.2} parent=1 // pred_check
      _
    $region7: #{step.2} parent=1 // pred_check_branch
      %20 = sbr.rel (0) target = $region9
    $region8: #{step.2} parent=1 // pred_region
      _
    $region9: #{step.2} parent=1 // pred_fallthru
      _
    // Predicated region
    $region10: #{step.2} parent=1 // pred_check
      _
    $region11: #{step.2} parent=1 // pred_check_branch
      %22 = sbr.rel (0) target = $region13
    $region12: #{step.2} parent=1 // pred_region
      _
    $region13: #{step.2} parent=1 // pred_fallthru
      _
    // Predicated region
    $region14: #{step.2} parent=1 // pred_check
      _
    $region15: #{step.2} parent=1 // pred_check_branch
      %24 = sbr.rel (0) target = $region17
    $region16: #{step.2} parent=1 // pred_region
      %25 = dma.done [#allocation3], 16
    $region17: #{step.2} parent=1 // pred_fallthru
      _
    %26 = sfence
    %s27 = sld [smem:[#allocation2]]
    %s28 = sld [smem:[#allocation2 + $0x1]]
    %v29 = vld [vmem:[%s1] sm:$0xff]
    %v30 = vld [vmem:[%s1 + $0x8] sm:$0xff]
    %v31 = vld [vmem:[%s1 + $0x10] sm:$0xff]
    %v32 = vld [vmem:[%s1 + $0x18] sm:$0xff]
    %v33 = vld [vmem:[%s1 + $0x20] sm:$0xff]
    %v34 = vld [vmem:[%s1 + $0x28] sm:$0xff]
    %v35 = vld [vmem:[%s1 + $0x30] sm:$0xff]
    %v36 = vld [vmem:[%s1 + $0x38] sm:$0xff]
    %v37 = vld [vmem:[%s1 + $0x40] sm:$0xff]
    %v38 = vld [vmem:[%s1 + $0x48] sm:$0xff]
    %v39 = vld [vmem:[%s1 + $0x50] sm:$0xff]
    %v40 = vld [vmem:[%s1 + $0x58] sm:$0xff]
    %v41 = vld [vmem:[%s1 + $0x60] sm:$0xff]
    %v42 = vld [vmem:[%s1 + $0x68] sm:$0xff]
    %v43 = vld [vmem:[%s1 + $0x70] sm:$0xff]
    %v44 = vld [vmem:[%s1 + $0x78] sm:$0xff]
    %v45 = vld [vmem:[%s1 + $0x80] sm:$0xff]
    %v46 = vld [vmem:[%s1 + $0x88] sm:$0xff]
    %v47 = vld [vmem:[%s1 + $0x90] sm:$0xff]
    %v48 = vld [vmem:[%s1 + $0x98] sm:$0xff]
    %v49 = vld [vmem:[%s1 + $0xa0] sm:$0xff]
    %v50 = vld [vmem:[%s1 + $0xa8] sm:$0xff]
    %v51 = vld [vmem:[%s1 + $0xb0] sm:$0xff]
    %v52 = vld [vmem:[%s1 + $0xb8] sm:$0xff]
    %v53 = vld [vmem:[%s1 + $0xc0] sm:$0xff]
    %v54 = vld [vmem:[%s1 + $0xc8] sm:$0xff]
    %v55 = vld [vmem:[%s1 + $0xd0] sm:$0xff]
    %v56 = vld [vmem:[%s1 + $0xd8] sm:$0xff]
    %v57 = vld [vmem:[%s1 + $0xe0] sm:$0xff]
    %v58 = vld [vmem:[%s1 + $0xe8] sm:$0xff]
    %v59 = vld [vmem:[%s1 + $0xf0] sm:$0xff]
    %v60 = vld [vmem:[%s1 + $0xf8] sm:$0xff]
    %v61 = vld [vmem:[%s1 + $0x100] sm:$0xff]
    %v62 = vld [vmem:[%s1 + $0x108] sm:$0xff]
    %v63 = vld [vmem:[%s1 + $0x110] sm:$0xff]
    %v64 = vld [vmem:[%s1 + $0x118] sm:$0xff]
    %v65 = vld [vmem:[%s1 + $0x120] sm:$0xff]
    %v66 = vld [vmem:[%s1 + $0x128] sm:$0xff]
    %v67 = vld [vmem:[%s1 + $0x130] sm:$0xff]
    %v68 = vld [vmem:[%s1 + $0x138] sm:$0xff]
    %v69 = vld [vmem:[%s1 + $0x140] sm:$0xff]
    %v70 = vld [vmem:[%s1 + $0x148] sm:$0xff]
    %v71 = vld [vmem:[%s1 + $0x150] sm:$0xff]
    %v72 = vld [vmem:[%s1 + $0x158] sm:$0xff]
    %v73 = vld [vmem:[%s1 + $0x160] sm:$0xff]
    %v74 = vld [vmem:[%s1 + $0x168] sm:$0xff]
    %v75 = vld [vmem:[%s1 + $0x170] sm:$0xff]
    %v76 = vld [vmem:[%s1 + $0x178] sm:$0xff]
    %v77 = vld [vmem:[%s1 + $0x180] sm:$0xff]
    %v78 = vld [vmem:[%s1 + $0x188] sm:$0xff]
    %v79 = vld [vmem:[%s1 + $0x190] sm:$0xff]
    %v80 = vld [vmem:[%s1 + $0x198] sm:$0xff]
    %v81 = vld [vmem:[%s1 + $0x1a0] sm:$0xff]
    %v82 = vld [vmem:[%s1 + $0x1a8] sm:$0xff]
    %v83 = vld [vmem:[%s1 + $0x1b0] sm:$0xff]
    %v84 = vld [vmem:[%s1 + $0x1b8] sm:$0xff]
    %v85 = vld [vmem:[%s1 + $0x1c0] sm:$0xff]
    %v86 = vld [vmem:[%s1 + $0x1c8] sm:$0xff]
    %v87 = vld [vmem:[%s1 + $0x1d0] sm:$0xff]
    %v88 = vld [vmem:[%s1 + $0x1d8] sm:$0xff]
    %v89 = vld [vmem:[%s1 + $0x1e0] sm:$0xff]
    %v90 = vld [vmem:[%s1 + $0x1e8] sm:$0xff]
    %v91 = vld [vmem:[%s1 + $0x1f0] sm:$0xff]
    %v92 = vld [vmem:[%s1 + $0x1f8] sm:$0xff]
    %v93 = vld [vmem:[%s1 + $0x200] sm:$0xff]
    %v94 = vld [vmem:[%s1 + $0x208] sm:$0xff]
    %v95 = vld [vmem:[%s1 + $0x210] sm:$0xff]
    %v96 = vld [vmem:[%s1 + $0x218] sm:$0xff]
    %v97 = vld [vmem:[%s1 + $0x220] sm:$0xff]
    %v98 = vld [vmem:[%s1 + $0x228] sm:$0xff]
    %v99 = vld [vmem:[%s1 + $0x230] sm:$0xff]
    %v100 = vld [vmem:[%s1 + $0x238] sm:$0xff]
    %v101 = vld [vmem:[%s1 + $0x240] sm:$0xff]
    %v102 = vld [vmem:[%s1 + $0x248] sm:$0xff]
    %v103 = vld [vmem:[%s1 + $0x250] sm:$0xff]
    %v104 = vld [vmem:[%s1 + $0x258] sm:$0xff]
    %v105 = vld [vmem:[%s1 + $0x260] sm:$0xff]
    %v106 = vld [vmem:[%s1 + $0x268] sm:$0xff]
    %v107 = vld [vmem:[%s1 + $0x270] sm:$0xff]
    %v108 = vld [vmem:[%s1 + $0x278] sm:$0xff]
    %v109 = vld [vmem:[%s1 + $0x280] sm:$0xff]
    %v110 = vld [vmem:[%s1 + $0x288] sm:$0xff]
    %v111 = vld [vmem:[%s1 + $0x290] sm:$0xff]
    %v112 = vld [vmem:[%s1 + $0x298] sm:$0xff]
    %v113 = vld [vmem:[%s1 + $0x2a0] sm:$0xff]
    %v114 = vld [vmem:[%s1 + $0x2a8] sm:$0xff]
    %v115 = vld [vmem:[%s1 + $0x2b0] sm:$0xff]
    %v116 = vld [vmem:[%s1 + $0x2b8] sm:$0xff]
    %v117 = vld [vmem:[%s1 + $0x2c0] sm:$0xff]
    %v118 = vld [vmem:[%s1 + $0x2c8] sm:$0xff]
    %v119 = vld [vmem:[%s1 + $0x2d0] sm:$0xff]
    %v120 = vld [vmem:[%s1 + $0x2d8] sm:$0xff]
    %v121 = vld [vmem:[%s1 + $0x2e0] sm:$0xff]
    %v122 = vld [vmem:[%s1 + $0x2e8] sm:$0xff]
    %v123 = vld [vmem:[%s1 + $0x2f0] sm:$0xff]
    %v124 = vld [vmem:[%s1 + $0x2f8] sm:$0xff]
    %v125 = vld [vmem:[%s1 + $0x300] sm:$0xff]
    %v126 = vld [vmem:[%s1 + $0x308] sm:$0xff]
    %v127 = vld [vmem:[%s1 + $0x310] sm:$0xff]
    %v128 = vld [vmem:[%s1 + $0x318] sm:$0xff]
    %v129 = vld [vmem:[%s1 + $0x320] sm:$0xff]
    %v130 = vld [vmem:[%s1 + $0x328] sm:$0xff]
    %v131 = vld [vmem:[%s1 + $0x330] sm:$0xff]
    %v132 = vld [vmem:[%s1 + $0x338] sm:$0xff]
    %v133 = vld [vmem:[%s1 + $0x340] sm:$0xff]
    %v134 = vld [vmem:[%s1 + $0x348] sm:$0xff]
    %v135 = vld [vmem:[%s1 + $0x350] sm:$0xff]
    %v136 = vld [vmem:[%s1 + $0x358] sm:$0xff]
    %v137 = vld [vmem:[%s1 + $0x360] sm:$0xff]
    %v138 = vld [vmem:[%s1 + $0x368] sm:$0xff]
    %v139 = vld [vmem:[%s1 + $0x370] sm:$0xff]
    %v140 = vld [vmem:[%s1 + $0x378] sm:$0xff]
    %v141 = vld [vmem:[%s1 + $0x380] sm:$0xff]
    %v142 = vld [vmem:[%s1 + $0x388] sm:$0xff]
    %v143 = vld [vmem:[%s1 + $0x390] sm:$0xff]
    %v144 = vld [vmem:[%s1 + $0x398] sm:$0xff]
    %v145 = vld [vmem:[%s1 + $0x3a0] sm:$0xff]
    %v146 = vld [vmem:[%s1 + $0x3a8] sm:$0xff]
    %v147 = vld [vmem:[%s1 + $0x3b0] sm:$0xff]
    %v148 = vld [vmem:[%s1 + $0x3b8] sm:$0xff]
    %v149 = vld [vmem:[%s1 + $0x3c0] sm:$0xff]
    %v150 = vld [vmem:[%s1 + $0x3c8] sm:$0xff]
    %v151 = vld [vmem:[%s1 + $0x3d0] sm:$0xff]
    %v152 = vld [vmem:[%s1 + $0x3d8] sm:$0xff]
    %v153 = vld [vmem:[%s1 + $0x3e0] sm:$0xff]
    %v154 = vld [vmem:[%s1 + $0x3e8] sm:$0xff]
    %v155 = vld [vmem:[%s1 + $0x3f0] sm:$0xff]
    %v156 = vld [vmem:[%s1 + $0x3f8] sm:$0xff]
    %v157 = vld [vmem:[%s1 + $0x400] sm:$0xff]
    %v158 = vld [vmem:[%s1 + $0x408] sm:$0xff]
    %v159 = vld [vmem:[%s1 + $0x410] sm:$0xff]
    %v160 = vld [vmem:[%s1 + $0x418] sm:$0xff]
    %v161 = vld [vmem:[%s1 + $0x420] sm:$0xff]
    %v162 = vld [vmem:[%s1 + $0x428] sm:$0xff]
    %v163 = vld [vmem:[%s1 + $0x430] sm:$0xff]
    %v164 = vld [vmem:[%s1 + $0x438] sm:$0xff]
    %v165 = vld [vmem:[%s1 + $0x440] sm:$0xff]
    %v166 = vld [vmem:[%s1 + $0x448] sm:$0xff]
    %v167 = vld [vmem:[%s1 + $0x450] sm:$0xff]
    %v168 = vld [vmem:[%s1 + $0x458] sm:$0xff]
    %v169 = vld [vmem:[%s1 + $0x460] sm:$0xff]
    %v170 = vld [vmem:[%s1 + $0x468] sm:$0xff]
    %v171 = vld [vmem:[%s1 + $0x470] sm:$0xff]
    %v172 = vld [vmem:[%s1 + $0x478] sm:$0xff]
    %v173 = vld [vmem:[%s1 + $0x480] sm:$0xff]
    %v174 = vld [vmem:[%s1 + $0x488] sm:$0xff]
    %v175 = vld [vmem:[%s1 + $0x490] sm:$0xff]
    %v176 = vld [vmem:[%s1 + $0x498] sm:$0xff]
    %v177 = vld [vmem:[%s1 + $0x4a0] sm:$0xff]
    %v178 = vld [vmem:[%s1 + $0x4a8] sm:$0xff]
    %v179 = vld [vmem:[%s1 + $0x4b0] sm:$0xff]
    %v180 = vld [vmem:[%s1 + $0x4b8] sm:$0xff]
    %v181 = vld [vmem:[%s1 + $0x4c0] sm:$0xff]
    %v182 = vld [vmem:[%s1 + $0x4c8] sm:$0xff]
    %v183 = vld [vmem:[%s1 + $0x4d0] sm:$0xff]
    %v184 = vld [vmem:[%s1 + $0x4d8] sm:$0xff]
    %v185 = vld [vmem:[%s1 + $0x4e0] sm:$0xff]
    %v186 = vld [vmem:[%s1 + $0x4e8] sm:$0xff]
    %v187 = vld [vmem:[%s1 + $0x4f0] sm:$0xff]
    %v188 = vld [vmem:[%s1 + $0x4f8] sm:$0xff]
    %v189 = vld [vmem:[%s1 + $0x500] sm:$0xff]
    %v190 = vld [vmem:[%s1 + $0x508] sm:$0xff]
    %v191 = vld [vmem:[%s1 + $0x510] sm:$0xff]
    %v192 = vld [vmem:[%s1 + $0x518] sm:$0xff]
    %v193 = vld [vmem:[%s1 + $0x520] sm:$0xff]
    %v194 = vld [vmem:[%s1 + $0x528] sm:$0xff]
    %v195 = vld [vmem:[%s1 + $0x530] sm:$0xff]
    %v196 = vld [vmem:[%s1 + $0x538] sm:$0xff]
    %v197 = vld [vmem:[%s1 + $0x540] sm:$0xff]
    %v198 = vld [vmem:[%s1 + $0x548] sm:$0xff]
    %v199 = vld [vmem:[%s1 + $0x550] sm:$0xff]
    %v200 = vld [vmem:[%s1 + $0x558] sm:$0xff]
    %v201 = vld [vmem:[%s1 + $0x560] sm:$0xff]
    %v202 = vld [vmem:[%s1 + $0x568] sm:$0xff]
    %v203 = vld [vmem:[%s1 + $0x570] sm:$0xff]
    %v204 = vld [vmem:[%s1 + $0x578] sm:$0xff]
    %v205 = vld [vmem:[%s1 + $0x580] sm:$0xff]
    %v206 = vld [vmem:[%s1 + $0x588] sm:$0xff]
    %v207 = vld [vmem:[%s1 + $0x590] sm:$0xff]
    %v208 = vld [vmem:[%s1 + $0x598] sm:$0xff]
    %v209 = vld [vmem:[%s1 + $0x5a0] sm:$0xff]
    %v210 = vld [vmem:[%s1 + $0x5a8] sm:$0xff]
    %v211 = vld [vmem:[%s1 + $0x5b0] sm:$0xff]
    %v212 = vld [vmem:[%s1 + $0x5b8] sm:$0xff]
    %v213 = vld [vmem:[%s1 + $0x5c0] sm:$0xff]
    %v214 = vld [vmem:[%s1 + $0x5c8] sm:$0xff]
    %v215 = vld [vmem:[%s1 + $0x5d0] sm:$0xff]
    %v216 = vld [vmem:[%s1 + $0x5d8] sm:$0xff]
    %v217 = vld [vmem:[%s1 + $0x5e0] sm:$0xff]
    %v218 = vld [vmem:[%s1 + $0x5e8] sm:$0xff]
    %v219 = vld [vmem:[%s1 + $0x5f0] sm:$0xff]
    %v220 = vld [vmem:[%s1 + $0x5f8] sm:$0xff]
    %v221 = vld [vmem:[%s1 + $0x600] sm:$0xff]
    %v222 = vld [vmem:[%s1 + $0x608] sm:$0xff]
    %v223 = vld [vmem:[%s1 + $0x610] sm:$0xff]
    %v224 = vld [vmem:[%s1 + $0x618] sm:$0xff]
    %v225 = vld [vmem:[%s1 + $0x620] sm:$0xff]
    %v226 = vld [vmem:[%s1 + $0x628] sm:$0xff]
    %v227 = vld [vmem:[%s1 + $0x630] sm:$0xff]
    %v228 = vld [vmem:[%s1 + $0x638] sm:$0xff]
    %v229 = vld [vmem:[%s1 + $0x640] sm:$0xff]
    %v230 = vld [vmem:[%s1 + $0x648] sm:$0xff]
    %v231 = vld [vmem:[%s1 + $0x650] sm:$0xff]
    %v232 = vld [vmem:[%s1 + $0x658] sm:$0xff]
    %v233 = vld [vmem:[%s1 + $0x660] sm:$0xff]
    %v234 = vld [vmem:[%s1 + $0x668] sm:$0xff]
    %v235 = vld [vmem:[%s1 + $0x670] sm:$0xff]
    %v236 = vld [vmem:[%s1 + $0x678] sm:$0xff]
    %v237 = vld [vmem:[%s1 + $0x680] sm:$0xff]
    %v238 = vld [vmem:[%s1 + $0x688] sm:$0xff]
    %v239 = vld [vmem:[%s1 + $0x690] sm:$0xff]
    %v240 = vld [vmem:[%s1 + $0x698] sm:$0xff]
    %v241 = vld [vmem:[%s1 + $0x6a0] sm:$0xff]
    %v242 = vld [vmem:[%s1 + $0x6a8] sm:$0xff]
    %v243 = vld [vmem:[%s1 + $0x6b0] sm:$0xff]
    %v244 = vld [vmem:[%s1 + $0x6b8] sm:$0xff]
    %v245 = vld [vmem:[%s1 + $0x6c0] sm:$0xff]
    %v246 = vld [vmem:[%s1 + $0x6c8] sm:$0xff]
    %v247 = vld [vmem:[%s1 + $0x6d0] sm:$0xff]
    %v248 = vld [vmem:[%s1 + $0x6d8] sm:$0xff]
    %v249 = vld [vmem:[%s1 + $0x6e0] sm:$0xff]
    %v250 = vld [vmem:[%s1 + $0x6e8] sm:$0xff]
    %v251 = vld [vmem:[%s1 + $0x6f0] sm:$0xff]
    %v252 = vld [vmem:[%s1 + $0x6f8] sm:$0xff]
    %v253 = vld [vmem:[%s1 + $0x700] sm:$0xff]
    %v254 = vld [vmem:[%s1 + $0x708] sm:$0xff]
    %v255 = vld [vmem:[%s1 + $0x710] sm:$0xff]
    %v256 = vld [vmem:[%s1 + $0x718] sm:$0xff]
    %v257 = vld [vmem:[%s1 + $0x720] sm:$0xff]
    %v258 = vld [vmem:[%s1 + $0x728] sm:$0xff]
    %v259 = vld [vmem:[%s1 + $0x730] sm:$0xff]
    %v260 = vld [vmem:[%s1 + $0x738] sm:$0xff]
    %v261 = vld [vmem:[%s1 + $0x740] sm:$0xff]
    %v262 = vld [vmem:[%s1 + $0x748] sm:$0xff]
    %v263 = vld [vmem:[%s1 + $0x750] sm:$0xff]
    %v264 = vld [vmem:[%s1 + $0x758] sm:$0xff]
    %v265 = vld [vmem:[%s1 + $0x760] sm:$0xff]
    %v266 = vld [vmem:[%s1 + $0x768] sm:$0xff]
    %v267 = vld [vmem:[%s1 + $0x770] sm:$0xff]
    %v268 = vld [vmem:[%s1 + $0x778] sm:$0xff]
    %v269 = vld [vmem:[%s1 + $0x780] sm:$0xff]
    %v270 = vld [vmem:[%s1 + $0x788] sm:$0xff]
    %v271 = vld [vmem:[%s1 + $0x790] sm:$0xff]
    %v272 = vld [vmem:[%s1 + $0x798] sm:$0xff]
    %v273 = vld [vmem:[%s1 + $0x7a0] sm:$0xff]
    %v274 = vld [vmem:[%s1 + $0x7a8] sm:$0xff]
    %v275 = vld [vmem:[%s1 + $0x7b0] sm:$0xff]
    %v276 = vld [vmem:[%s1 + $0x7b8] sm:$0xff]
    %v277 = vld [vmem:[%s1 + $0x7c0] sm:$0xff]
    %v278 = vld [vmem:[%s1 + $0x7c8] sm:$0xff]
    %v279 = vld [vmem:[%s1 + $0x7d0] sm:$0xff]
    %v280 = vld [vmem:[%s1 + $0x7d8] sm:$0xff]
    %v281 = vld [vmem:[%s1 + $0x7e0] sm:$0xff]
    %v282 = vld [vmem:[%s1 + $0x7e8] sm:$0xff]
    %v283 = vld [vmem:[%s1 + $0x7f0] sm:$0xff]
    %v284 = vld [vmem:[%s1 + $0x7f8] sm:$0xff]
    %v285 = vld [vmem:[%s1 + $0x800] sm:$0xff]
    %v286 = vld [vmem:[%s1 + $0x808] sm:$0xff]
    %v287 = vld [vmem:[%s1 + $0x810] sm:$0xff]
    %v288 = vld [vmem:[%s2] sm:$0xff]
    %v289 = vld [vmem:[%s2 + $0x8] sm:$0xff]
    %v290 = vld [vmem:[%s2 + $0x10] sm:$0xff]
    %v291 = vld [vmem:[%s2 + $0x18] sm:$0xff]
    %v292 = vld [vmem:[%s2 + $0x20] sm:$0xff]
    %v293 = vld [vmem:[%s2 + $0x28] sm:$0xff]
    %v294 = vld [vmem:[%s2 + $0x30] sm:$0xff]
    %v295 = vld [vmem:[%s2 + $0x38] sm:$0xff]
    %v296 = vld [vmem:[%s2 + $0x40] sm:$0xff]
    %v297 = vld [vmem:[%s2 + $0x48] sm:$0xff]
    %v298 = vld [vmem:[%s2 + $0x50] sm:$0xff]
    %v299 = vld [vmem:[%s2 + $0x58] sm:$0xff]
    %v300 = vld [vmem:[%s2 + $0x60] sm:$0xff]
    %v301 = vld [vmem:[%s2 + $0x68] sm:$0xff]
    %v302 = vld [vmem:[%s2 + $0x70] sm:$0xff]
    %v303 = vld [vmem:[%s2 + $0x78] sm:$0xff]
    %v304 = vld [vmem:[%s2 + $0x80] sm:$0xff]
    %v305 = vld [vmem:[%s2 + $0x88] sm:$0xff]
    %v306 = vld [vmem:[%s2 + $0x90] sm:$0xff]
    %v307 = vld [vmem:[%s2 + $0x98] sm:$0xff]
    %v308 = vld [vmem:[%s2 + $0xa0] sm:$0xff]
    %v309 = vld [vmem:[%s2 + $0xa8] sm:$0xff]
    %v310 = vld [vmem:[%s2 + $0xb0] sm:$0xff]
    %v311 = vld [vmem:[%s2 + $0xb8] sm:$0xff]
    %v312 = vld [vmem:[%s2 + $0xc0] sm:$0xff]
    %v313 = vld [vmem:[%s2 + $0xc8] sm:$0xff]
    %v314 = vld [vmem:[%s2 + $0xd0] sm:$0xff]
    %v315 = vld [vmem:[%s2 + $0xd8] sm:$0xff]
    %v316 = vld [vmem:[%s2 + $0xe0] sm:$0xff]
    %v317 = vld [vmem:[%s2 + $0xe8] sm:$0xff]
    %v318 = vld [vmem:[%s2 + $0xf0] sm:$0xff]
    %v319 = vld [vmem:[%s2 + $0xf8] sm:$0xff]
    %v320 = vld [vmem:[%s2 + $0x100] sm:$0xff]
    %v321 = vld [vmem:[%s2 + $0x108] sm:$0xff]
    %v322 = vld [vmem:[%s2 + $0x110] sm:$0xff]
    %v323 = vld [vmem:[%s2 + $0x118] sm:$0xff]
    %v324 = vld [vmem:[%s2 + $0x120] sm:$0xff]
    %v325 = vld [vmem:[%s2 + $0x128] sm:$0xff]
    %v326 = vld [vmem:[%s2 + $0x130] sm:$0xff]
    %v327 = vld [vmem:[%s2 + $0x138] sm:$0xff]
    %v328 = vld [vmem:[%s2 + $0x140] sm:$0xff]
    %v329 = vld [vmem:[%s2 + $0x148] sm:$0xff]
    %v330 = vld [vmem:[%s2 + $0x150] sm:$0xff]
    %v331 = vld [vmem:[%s2 + $0x158] sm:$0xff]
    %v332 = vld [vmem:[%s2 + $0x160] sm:$0xff]
    %v333 = vld [vmem:[%s2 + $0x168] sm:$0xff]
    %v334 = vld [vmem:[%s2 + $0x170] sm:$0xff]
    %v335 = vld [vmem:[%s2 + $0x178] sm:$0xff]
    %v336 = vld [vmem:[%s2 + $0x180] sm:$0xff]
    %v337 = vld [vmem:[%s2 + $0x188] sm:$0xff]
    %v338 = vld [vmem:[%s2 + $0x190] sm:$0xff]
    %v339 = vld [vmem:[%s2 + $0x198] sm:$0xff]
    %v340 = vld [vmem:[%s2 + $0x1a0] sm:$0xff]
    %v341 = vld [vmem:[%s2 + $0x1a8] sm:$0xff]
    %v342 = vld [vmem:[%s2 + $0x1b0] sm:$0xff]
    %v343 = vld [vmem:[%s2 + $0x1b8] sm:$0xff]
    %v344 = vld [vmem:[%s2 + $0x1c0] sm:$0xff]
    %v345 = vld [vmem:[%s2 + $0x1c8] sm:$0xff]
    %v346 = vld [vmem:[%s2 + $0x1d0] sm:$0xff]
    %v347 = vld [vmem:[%s2 + $0x1d8] sm:$0xff]
    %v348 = vld [vmem:[%s2 + $0x1e0] sm:$0xff]
    %v349 = vld [vmem:[%s2 + $0x1e8] sm:$0xff]
    %v350 = vld [vmem:[%s2 + $0x1f0] sm:$0xff]
    %v351 = vld [vmem:[%s2 + $0x1f8] sm:$0xff]
    %v352 = vld [vmem:[%s2 + $0x200] sm:$0xff]
    %v353 = vld [vmem:[%s2 + $0x208] sm:$0xff]
    %v354 = vld [vmem:[%s2 + $0x210] sm:$0xff]
    %v355 = vld [vmem:[%s2 + $0x218] sm:$0xff]
    %v356 = vld [vmem:[%s2 + $0x220] sm:$0xff]
    %v357 = vld [vmem:[%s2 + $0x228] sm:$0xff]
    %v358 = vld [vmem:[%s2 + $0x230] sm:$0xff]
    %v359 = vld [vmem:[%s2 + $0x238] sm:$0xff]
    %v360 = vld [vmem:[%s2 + $0x240] sm:$0xff]
    %v361 = vld [vmem:[%s2 + $0x248] sm:$0xff]
    %v362 = vld [vmem:[%s2 + $0x250] sm:$0xff]
    %v363 = vld [vmem:[%s2 + $0x258] sm:$0xff]
    %v364 = vld [vmem:[%s2 + $0x260] sm:$0xff]
    %v365 = vld [vmem:[%s2 + $0x268] sm:$0xff]
    %v366 = vld [vmem:[%s2 + $0x270] sm:$0xff]
    %v367 = vld [vmem:[%s2 + $0x278] sm:$0xff]
    %v368 = vld [vmem:[%s2 + $0x280] sm:$0xff]
    %v369 = vld [vmem:[%s2 + $0x288] sm:$0xff]
    %v370 = vld [vmem:[%s2 + $0x290] sm:$0xff]
    %v371 = vld [vmem:[%s2 + $0x298] sm:$0xff]
    %v372 = vld [vmem:[%s2 + $0x2a0] sm:$0xff]
    %v373 = vld [vmem:[%s2 + $0x2a8] sm:$0xff]
    %v374 = vld [vmem:[%s2 + $0x2b0] sm:$0xff]
    %v375 = vld [vmem:[%s2 + $0x2b8] sm:$0xff]
    %v376 = vld [vmem:[%s2 + $0x2c0] sm:$0xff]
    %v377 = vld [vmem:[%s2 + $0x2c8] sm:$0xff]
    %v378 = vld [vmem:[%s2 + $0x2d0] sm:$0xff]
    %v379 = vld [vmem:[%s2 + $0x2d8] sm:$0xff]
    %v380 = vld [vmem:[%s2 + $0x2e0] sm:$0xff]
    %v381 = vld [vmem:[%s2 + $0x2e8] sm:$0xff]
    %v382 = vld [vmem:[%s2 + $0x2f0] sm:$0xff]
    %v383 = vld [vmem:[%s2 + $0x2f8] sm:$0xff]
    %v384 = vld [vmem:[%s2 + $0x300] sm:$0xff]
    %v385 = vld [vmem:[%s2 + $0x308] sm:$0xff]
    %v386 = vld [vmem:[%s2 + $0x310] sm:$0xff]
    %v387 = vld [vmem:[%s2 + $0x318] sm:$0xff]
    %v388 = vld [vmem:[%s2 + $0x320] sm:$0xff]
    %v389 = vld [vmem:[%s2 + $0x328] sm:$0xff]
    %v390 = vld [vmem:[%s2 + $0x330] sm:$0xff]
    %v391 = vld [vmem:[%s2 + $0x338] sm:$0xff]
    %v392 = vld [vmem:[%s2 + $0x340] sm:$0xff]
    %v393 = vld [vmem:[%s2 + $0x348] sm:$0xff]
    %v394 = vld [vmem:[%s2 + $0x350] sm:$0xff]
    %v395 = vld [vmem:[%s2 + $0x358] sm:$0xff]
    %v396 = vld [vmem:[%s2 + $0x360] sm:$0xff]
    %v397 = vld [vmem:[%s2 + $0x368] sm:$0xff]
    %v398 = vld [vmem:[%s2 + $0x370] sm:$0xff]
    %v399 = vld [vmem:[%s2 + $0x378] sm:$0xff]
    %v400 = vld [vmem:[%s2 + $0x380] sm:$0xff]
    %v401 = vld [vmem:[%s2 + $0x388] sm:$0xff]
    %v402 = vld [vmem:[%s2 + $0x390] sm:$0xff]
    %v403 = vld [vmem:[%s2 + $0x398] sm:$0xff]
    %v404 = vld [vmem:[%s2 + $0x3a0] sm:$0xff]
    %v405 = vld [vmem:[%s2 + $0x3a8] sm:$0xff]
    %v406 = vld [vmem:[%s2 + $0x3b0] sm:$0xff]
    %v407 = vld [vmem:[%s2 + $0x3b8] sm:$0xff]
    %v408 = vld [vmem:[%s2 + $0x3c0] sm:$0xff]
    %v409 = vld [vmem:[%s2 + $0x3c8] sm:$0xff]
    %v410 = vld [vmem:[%s2 + $0x3d0] sm:$0xff]
    %v411 = vld [vmem:[%s2 + $0x3d8] sm:$0xff]
    %v412 = vld [vmem:[%s2 + $0x3e0] sm:$0xff]
    %v413 = vld [vmem:[%s2 + $0x3e8] sm:$0xff]
    %v414 = vld [vmem:[%s2 + $0x3f0] sm:$0xff]
    %v415 = vld [vmem:[%s2 + $0x3f8] sm:$0xff]
    %v416 = vld [vmem:[%s2 + $0x400] sm:$0xff]
    %v417 = vld [vmem:[%s2 + $0x408] sm:$0xff]
    %v418 = vld [vmem:[%s2 + $0x410] sm:$0xff]
    %v419 = vld [vmem:[%s2 + $0x418] sm:$0xff]
    %v420 = vld [vmem:[%s2 + $0x420] sm:$0xff]
    %v421 = vld [vmem:[%s2 + $0x428] sm:$0xff]
    %v422 = vld [vmem:[%s2 + $0x430] sm:$0xff]
    %v423 = vld [vmem:[%s2 + $0x438] sm:$0xff]
    %v424 = vld [vmem:[%s2 + $0x440] sm:$0xff]
    %v425 = vld [vmem:[%s2 + $0x448] sm:$0xff]
    %v426 = vld [vmem:[%s2 + $0x450] sm:$0xff]
    %v427 = vld [vmem:[%s2 + $0x458] sm:$0xff]
    %v428 = vld [vmem:[%s2 + $0x460] sm:$0xff]
    %v429 = vld [vmem:[%s2 + $0x468] sm:$0xff]
    %v430 = vld [vmem:[%s2 + $0x470] sm:$0xff]
    %v431 = vld [vmem:[%s2 + $0x478] sm:$0xff]
    %v432 = vld [vmem:[%s2 + $0x480] sm:$0xff]
    %v433 = vld [vmem:[%s2 + $0x488] sm:$0xff]
    %v434 = vld [vmem:[%s2 + $0x490] sm:$0xff]
    %v435 = vld [vmem:[%s2 + $0x498] sm:$0xff]
    %v436 = vld [vmem:[%s2 + $0x4a0] sm:$0xff]
    %v437 = vld [vmem:[%s2 + $0x4a8] sm:$0xff]
    %v438 = vld [vmem:[%s2 + $0x4b0] sm:$0xff]
    %v439 = vld [vmem:[%s2 + $0x4b8] sm:$0xff]
    %v440 = vld [vmem:[%s2 + $0x4c0] sm:$0xff]
    %v441 = vld [vmem:[%s2 + $0x4c8] sm:$0xff]
    %v442 = vld [vmem:[%s2 + $0x4d0] sm:$0xff]
    %v443 = vld [vmem:[%s2 + $0x4d8] sm:$0xff]
    %v444 = vld [vmem:[%s2 + $0x4e0] sm:$0xff]
    %v445 = vld [vmem:[%s2 + $0x4e8] sm:$0xff]
    %v446 = vld [vmem:[%s2 + $0x4f0] sm:$0xff]
    %v447 = vld [vmem:[%s2 + $0x4f8] sm:$0xff]
    %v448 = vld [vmem:[%s2 + $0x500] sm:$0xff]
    %v449 = vld [vmem:[%s2 + $0x508] sm:$0xff]
    %v450 = vld [vmem:[%s2 + $0x510] sm:$0xff]
    %v451 = vld [vmem:[%s2 + $0x518] sm:$0xff]
    %v452 = vld [vmem:[%s2 + $0x520] sm:$0xff]
    %v453 = vld [vmem:[%s2 + $0x528] sm:$0xff]
    %v454 = vld [vmem:[%s2 + $0x530] sm:$0xff]
    %v455 = vld [vmem:[%s2 + $0x538] sm:$0xff]
    %v456 = vld [vmem:[%s2 + $0x540] sm:$0xff]
    %v457 = vld [vmem:[%s2 + $0x548] sm:$0xff]
    %v458 = vld [vmem:[%s2 + $0x550] sm:$0xff]
    %v459 = vld [vmem:[%s2 + $0x558] sm:$0xff]
    %v460 = vld [vmem:[%s2 + $0x560] sm:$0xff]
    %v461 = vld [vmem:[%s2 + $0x568] sm:$0xff]
    %v462 = vld [vmem:[%s2 + $0x570] sm:$0xff]
    %v463 = vld [vmem:[%s2 + $0x578] sm:$0xff]
    %v464 = vld [vmem:[%s2 + $0x580] sm:$0xff]
    %v465 = vld [vmem:[%s2 + $0x588] sm:$0xff]
    %v466 = vld [vmem:[%s2 + $0x590] sm:$0xff]
    %v467 = vld [vmem:[%s2 + $0x598] sm:$0xff]
    %v468 = vld [vmem:[%s2 + $0x5a0] sm:$0xff]
    %v469 = vld [vmem:[%s2 + $0x5a8] sm:$0xff]
    %v470 = vld [vmem:[%s2 + $0x5b0] sm:$0xff]
    %v471 = vld [vmem:[%s2 + $0x5b8] sm:$0xff]
    %v472 = vld [vmem:[%s2 + $0x5c0] sm:$0xff]
    %v473 = vld [vmem:[%s2 + $0x5c8] sm:$0xff]
    %v474 = vld [vmem:[%s2 + $0x5d0] sm:$0xff]
    %v475 = vld [vmem:[%s2 + $0x5d8] sm:$0xff]
    %v476 = vld [vmem:[%s2 + $0x5e0] sm:$0xff]
    %v477 = vld [vmem:[%s2 + $0x5e8] sm:$0xff]
    %v478 = vld [vmem:[%s2 + $0x5f0] sm:$0xff]
    %v479 = vld [vmem:[%s2 + $0x5f8] sm:$0xff]
    %v480 = vld [vmem:[%s2 + $0x600] sm:$0xff]
    %v481 = vld [vmem:[%s2 + $0x608] sm:$0xff]
    %v482 = vld [vmem:[%s2 + $0x610] sm:$0xff]
    %v483 = vld [vmem:[%s2 + $0x618] sm:$0xff]
    %v484 = vld [vmem:[%s2 + $0x620] sm:$0xff]
    %v485 = vld [vmem:[%s2 + $0x628] sm:$0xff]
    %v486 = vld [vmem:[%s2 + $0x630] sm:$0xff]
    %v487 = vld [vmem:[%s2 + $0x638] sm:$0xff]
    %v488 = vld [vmem:[%s2 + $0x640] sm:$0xff]
    %v489 = vld [vmem:[%s2 + $0x648] sm:$0xff]
    %v490 = vld [vmem:[%s2 + $0x650] sm:$0xff]
    %v491 = vld [vmem:[%s2 + $0x658] sm:$0xff]
    %v492 = vld [vmem:[%s2 + $0x660] sm:$0xff]
    %v493 = vld [vmem:[%s2 + $0x668] sm:$0xff]
    %v494 = vld [vmem:[%s2 + $0x670] sm:$0xff]
    %v495 = vld [vmem:[%s2 + $0x678] sm:$0xff]
    %v496 = vld [vmem:[%s2 + $0x680] sm:$0xff]
    %v497 = vld [vmem:[%s2 + $0x688] sm:$0xff]
    %v498 = vld [vmem:[%s2 + $0x690] sm:$0xff]
    %v499 = vld [vmem:[%s2 + $0x698] sm:$0xff]
    %v500 = vld [vmem:[%s2 + $0x6a0] sm:$0xff]
    %v501 = vld [vmem:[%s2 + $0x6a8] sm:$0xff]
    %v502 = vld [vmem:[%s2 + $0x6b0] sm:$0xff]
    %v503 = vld [vmem:[%s2 + $0x6b8] sm:$0xff]
    %v504 = vld [vmem:[%s2 + $0x6c0] sm:$0xff]
    %v505 = vld [vmem:[%s2 + $0x6c8] sm:$0xff]
    %v506 = vld [vmem:[%s2 + $0x6d0] sm:$0xff]
    %v507 = vld [vmem:[%s2 + $0x6d8] sm:$0xff]
    %v508 = vld [vmem:[%s2 + $0x6e0] sm:$0xff]
    %v509 = vld [vmem:[%s2 + $0x6e8] sm:$0xff]
    %v510 = vld [vmem:[%s2 + $0x6f0] sm:$0xff]
    %v511 = vld [vmem:[%s2 + $0x6f8] sm:$0xff]
    %v512 = vld [vmem:[%s2 + $0x700] sm:$0xff]
    %v513 = vld [vmem:[%s2 + $0x708] sm:$0xff]
    %v514 = vld [vmem:[%s2 + $0x710] sm:$0xff]
    %v515 = vld [vmem:[%s2 + $0x718] sm:$0xff]
    %v516 = vld [vmem:[%s2 + $0x720] sm:$0xff]
    %v517 = vld [vmem:[%s2 + $0x728] sm:$0xff]
    %v518 = vld [vmem:[%s2 + $0x730] sm:$0xff]
    %v519 = vld [vmem:[%s2 + $0x738] sm:$0xff]
    %v520 = vld [vmem:[%s2 + $0x740] sm:$0xff]
    %v521 = vld [vmem:[%s2 + $0x748] sm:$0xff]
    %v522 = vld [vmem:[%s2 + $0x750] sm:$0xff]
    %v523 = vld [vmem:[%s2 + $0x758] sm:$0xff]
    %v524 = vld [vmem:[%s2 + $0x760] sm:$0xff]
    %v525 = vld [vmem:[%s2 + $0x768] sm:$0xff]
    %v526 = vld [vmem:[%s2 + $0x770] sm:$0xff]
    %v527 = vld [vmem:[%s2 + $0x778] sm:$0xff]
    %v528 = vld [vmem:[%s2 + $0x780] sm:$0xff]
    %v529 = vld [vmem:[%s2 + $0x788] sm:$0xff]
    %v530 = vld [vmem:[%s2 + $0x790] sm:$0xff]
    %v531 = vld [vmem:[%s2 + $0x798] sm:$0xff]
    %v532 = vld [vmem:[%s2 + $0x7a0] sm:$0xff]
    %v533 = vld [vmem:[%s2 + $0x7a8] sm:$0xff]
    %v534 = vld [vmem:[%s2 + $0x7b0] sm:$0xff]
    %v535 = vld [vmem:[%s2 + $0x7b8] sm:$0xff]
    %v536 = vld [vmem:[%s2 + $0x7c0] sm:$0xff]
    %v537 = vld [vmem:[%s2 + $0x7c8] sm:$0xff]
    %v538 = vld [vmem:[%s2 + $0x7d0] sm:$0xff]
    %v539 = vld [vmem:[%s2 + $0x7d8] sm:$0xff]
    %v540 = vld [vmem:[%s2 + $0x7e0] sm:$0xff]
    %v541 = vld [vmem:[%s2 + $0x7e8] sm:$0xff]
    %v542 = vld [vmem:[%s2 + $0x7f0] sm:$0xff]
    %v543 = vld [vmem:[%s2 + $0x7f8] sm:$0xff]
    %v544 = vld [vmem:[%s2 + $0x800] sm:$0xff]
    %v545 = vld [vmem:[%s2 + $0x808] sm:$0xff]
    %v546 = vld [vmem:[%s2 + $0x810] sm:$0xff]
    %v547 = vstv %s27
    %v548 = vmul.f32 %v547, %v29
    %v549 = vmul.f32 %v547, %v30
    %v550 = vmul.f32 %v547, %v31
    %v551 = vmul.f32 %v547, %v32
    %v552 = vmul.f32 %v547, %v33
    %v553 = vmul.f32 %v547, %v34
    %v554 = vmul.f32 %v547, %v35
    %v555 = vmul.f32 %v547, %v36
    %v556 = vmul.f32 %v547, %v37
    %v557 = vmul.f32 %v547, %v38
    %v558 = vmul.f32 %v547, %v39
    %v559 = vmul.f32 %v547, %v40
    %v560 = vmul.f32 %v547, %v41
    %v561 = vmul.f32 %v547, %v42
    %v562 = vmul.f32 %v547, %v43
    %v563 = vmul.f32 %v547, %v44
    %v564 = vmul.f32 %v547, %v45
    %v565 = vmul.f32 %v547, %v46
    %v566 = vmul.f32 %v547, %v47
    %v567 = vmul.f32 %v547, %v48
    %v568 = vmul.f32 %v547, %v49
    %v569 = vmul.f32 %v547, %v50
    %v570 = vmul.f32 %v547, %v51
    %v571 = vmul.f32 %v547, %v52
    %v572 = vmul.f32 %v547, %v53
    %v573 = vmul.f32 %v547, %v54
    %v574 = vmul.f32 %v547, %v55
    %v575 = vmul.f32 %v547, %v56
    %v576 = vmul.f32 %v547, %v57
    %v577 = vmul.f32 %v547, %v58
    %v578 = vmul.f32 %v547, %v59
    %v579 = vmul.f32 %v547, %v60
    %v580 = vmul.f32 %v547, %v61
    %v581 = vmul.f32 %v547, %v62
    %v582 = vmul.f32 %v547, %v63
    %v583 = vmul.f32 %v547, %v64
    %v584 = vmul.f32 %v547, %v65
    %v585 = vmul.f32 %v547, %v66
    %v586 = vmul.f32 %v547, %v67
    %v587 = vmul.f32 %v547, %v68
    %v588 = vmul.f32 %v547, %v69
    %v589 = vmul.f32 %v547, %v70
    %v590 = vmul.f32 %v547, %v71
    %v591 = vmul.f32 %v547, %v72
    %v592 = vmul.f32 %v547, %v73
    %v593 = vmul.f32 %v547, %v74
    %v594 = vmul.f32 %v547, %v75
    %v595 = vmul.f32 %v547, %v76
    %v596 = vmul.f32 %v547, %v77
    %v597 = vmul.f32 %v547, %v78
    %v598 = vmul.f32 %v547, %v79
    %v599 = vmul.f32 %v547, %v80
    %v600 = vmul.f32 %v547, %v81
    %v601 = vmul.f32 %v547, %v82
    %v602 = vmul.f32 %v547, %v83
    %v603 = vmul.f32 %v547, %v84
    %v604 = vmul.f32 %v547, %v85
    %v605 = vmul.f32 %v547, %v86
    %v606 = vmul.f32 %v547, %v87
    %v607 = vmul.f32 %v547, %v88
    %v608 = vmul.f32 %v547, %v89
    %v609 = vmul.f32 %v547, %v90
    %v610 = vmul.f32 %v547, %v91
    %v611 = vmul.f32 %v547, %v92
    %v612 = vmul.f32 %v547, %v93
    %v613 = vmul.f32 %v547, %v94
    %v614 = vmul.f32 %v547, %v95
    %v615 = vmul.f32 %v547, %v96
    %v616 = vmul.f32 %v547, %v97
    %v617 = vmul.f32 %v547, %v98
    %v618 = vmul.f32 %v547, %v99
    %v619 = vmul.f32 %v547, %v100
    %v620 = vmul.f32 %v547, %v101
    %v621 = vmul.f32 %v547, %v102
    %v622 = vmul.f32 %v547, %v103
    %v623 = vmul.f32 %v547, %v104
    %v624 = vmul.f32 %v547, %v105
    %v625 = vmul.f32 %v547, %v106
    %v626 = vmul.f32 %v547, %v107
    %v627 = vmul.f32 %v547, %v108
    %v628 = vmul.f32 %v547, %v109
    %v629 = vmul.f32 %v547, %v110
    %v630 = vmul.f32 %v547, %v111
    %v631 = vmul.f32 %v547, %v112
    %v632 = vmul.f32 %v547, %v113
    %v633 = vmul.f32 %v547, %v114
    %v634 = vmul.f32 %v547, %v115
    %v635 = vmul.f32 %v547, %v116
    %v636 = vmul.f32 %v547, %v117
    %v637 = vmul.f32 %v547, %v118
    %v638 = vmul.f32 %v547, %v119
    %v639 = vmul.f32 %v547, %v120
    %v640 = vmul.f32 %v547, %v121
    %v641 = vmul.f32 %v547, %v122
    %v642 = vmul.f32 %v547, %v123
    %v643 = vmul.f32 %v547, %v124
    %v644 = vmul.f32 %v547, %v125
    %v645 = vmul.f32 %v547, %v126
    %v646 = vmul.f32 %v547, %v127
    %v647 = vmul.f32 %v547, %v128
    %v648 = vmul.f32 %v547, %v129
    %v649 = vmul.f32 %v547, %v130
    %v650 = vmul.f32 %v547, %v131
    %v651 = vmul.f32 %v547, %v132
    %v652 = vmul.f32 %v547, %v133
    %v653 = vmul.f32 %v547, %v134
    %v654 = vmul.f32 %v547, %v135
    %v655 = vmul.f32 %v547, %v136
    %v656 = vmul.f32 %v547, %v137
    %v657 = vmul.f32 %v547, %v138
    %v658 = vmul.f32 %v547, %v139
    %v659 = vmul.f32 %v547, %v140
    %v660 = vmul.f32 %v547, %v141
    %v661 = vmul.f32 %v547, %v142
    %v662 = vmul.f32 %v547, %v143
    %v663 = vmul.f32 %v547, %v144
    %v664 = vmul.f32 %v547, %v145
    %v665 = vmul.f32 %v547, %v146
    %v666 = vmul.f32 %v547, %v147
    %v667 = vmul.f32 %v547, %v148
    %v668 = vmul.f32 %v547, %v149
    %v669 = vmul.f32 %v547, %v150
    %v670 = vmul.f32 %v547, %v151
    %v671 = vmul.f32 %v547, %v152
    %v672 = vmul.f32 %v547, %v153
    %v673 = vmul.f32 %v547, %v154
    %v674 = vmul.f32 %v547, %v155
    %v675 = vmul.f32 %v547, %v156
    %v676 = vmul.f32 %v547, %v157
    %v677 = vmul.f32 %v547, %v158
    %v678 = vmul.f32 %v547, %v159
    %v679 = vmul.f32 %v547, %v160
    %v680 = vmul.f32 %v547, %v161
    %v681 = vmul.f32 %v547, %v162
    %v682 = vmul.f32 %v547, %v163
    %v683 = vmul.f32 %v547, %v164
    %v684 = vmul.f32 %v547, %v165
    %v685 = vmul.f32 %v547, %v166
    %v686 = vmul.f32 %v547, %v167
    %v687 = vmul.f32 %v547, %v168
    %v688 = vmul.f32 %v547, %v169
    %v689 = vmul.f32 %v547, %v170
    %v690 = vmul.f32 %v547, %v171
    %v691 = vmul.f32 %v547, %v172
    %v692 = vmul.f32 %v547, %v173
    %v693 = vmul.f32 %v547, %v174
    %v694 = vmul.f32 %v547, %v175
    %v695 = vmul.f32 %v547, %v176
    %v696 = vmul.f32 %v547, %v177
    %v697 = vmul.f32 %v547, %v178
    %v698 = vmul.f32 %v547, %v179
    %v699 = vmul.f32 %v547, %v180
    %v700 = vmul.f32 %v547, %v181
    %v701 = vmul.f32 %v547, %v182
    %v702 = vmul.f32 %v547, %v183
    %v703 = vmul.f32 %v547, %v184
    %v704 = vmul.f32 %v547, %v185
    %v705 = vmul.f32 %v547, %v186
    %v706 = vmul.f32 %v547, %v187
    %v707 = vmul.f32 %v547, %v188
    %v708 = vmul.f32 %v547, %v189
    %v709 = vmul.f32 %v547, %v190
    %v710 = vmul.f32 %v547, %v191
    %v711 = vmul.f32 %v547, %v192
    %v712 = vmul.f32 %v547, %v193
    %v713 = vmul.f32 %v547, %v194
    %v714 = vmul.f32 %v547, %v195
    %v715 = vmul.f32 %v547, %v196
    %v716 = vmul.f32 %v547, %v197
    %v717 = vmul.f32 %v547, %v198
    %v718 = vmul.f32 %v547, %v199
    %v719 = vmul.f32 %v547, %v200
    %v720 = vmul.f32 %v547, %v201
    %v721 = vmul.f32 %v547, %v202
    %v722 = vmul.f32 %v547, %v203
    %v723 = vmul.f32 %v547, %v204
    %v724 = vmul.f32 %v547, %v205
    %v725 = vmul.f32 %v547, %v206
    %v726 = vmul.f32 %v547, %v207
    %v727 = vmul.f32 %v547, %v208
    %v728 = vmul.f32 %v547, %v209
    %v729 = vmul.f32 %v547, %v210
    %v730 = vmul.f32 %v547, %v211
    %v731 = vmul.f32 %v547, %v212
    %v732 = vmul.f32 %v547, %v213
    %v733 = vmul.f32 %v547, %v214
    %v734 = vmul.f32 %v547, %v215
    %v735 = vmul.f32 %v547, %v216
    %v736 = vmul.f32 %v547, %v217
    %v737 = vmul.f32 %v547, %v218
    %v738 = vmul.f32 %v547, %v219
    %v739 = vmul.f32 %v547, %v220
    %v740 = vmul.f32 %v547, %v221
    %v741 = vmul.f32 %v547, %v222
    %v742 = vmul.f32 %v547, %v223
    %v743 = vmul.f32 %v547, %v224
    %v744 = vmul.f32 %v547, %v225
    %v745 = vmul.f32 %v547, %v226
    %v746 = vmul.f32 %v547, %v227
    %v747 = vmul.f32 %v547, %v228
    %v748 = vmul.f32 %v547, %v229
    %v749 = vmul.f32 %v547, %v230
    %v750 = vmul.f32 %v547, %v231
    %v751 = vmul.f32 %v547, %v232
    %v752 = vmul.f32 %v547, %v233
    %v753 = vmul.f32 %v547, %v234
    %v754 = vmul.f32 %v547, %v235
    %v755 = vmul.f32 %v547, %v236
    %v756 = vmul.f32 %v547, %v237
    %v757 = vmul.f32 %v547, %v238
    %v758 = vmul.f32 %v547, %v239
    %v759 = vmul.f32 %v547, %v240
    %v760 = vmul.f32 %v547, %v241
    %v761 = vmul.f32 %v547, %v242
    %v762 = vmul.f32 %v547, %v243
    %v763 = vmul.f32 %v547, %v244
    %v764 = vmul.f32 %v547, %v245
    %v765 = vmul.f32 %v547, %v246
    %v766 = vmul.f32 %v547, %v247
    %v767 = vmul.f32 %v547, %v248
    %v768 = vmul.f32 %v547, %v249
    %v769 = vmul.f32 %v547, %v250
    %v770 = vmul.f32 %v547, %v251
    %v771 = vmul.f32 %v547, %v252
    %v772 = vmul.f32 %v547, %v253
    %v773 = vmul.f32 %v547, %v254
    %v774 = vmul.f32 %v547, %v255
    %v775 = vmul.f32 %v547, %v256
    %v776 = vmul.f32 %v547, %v257
    %v777 = vmul.f32 %v547, %v258
    %v778 = vmul.f32 %v547, %v259
    %v779 = vmul.f32 %v547, %v260
    %v780 = vmul.f32 %v547, %v261
    %v781 = vmul.f32 %v547, %v262
    %v782 = vmul.f32 %v547, %v263
    %v783 = vmul.f32 %v547, %v264
    %v784 = vmul.f32 %v547, %v265
    %v785 = vmul.f32 %v547, %v266
    %v786 = vmul.f32 %v547, %v267
    %v787 = vmul.f32 %v547, %v268
    %v788 = vmul.f32 %v547, %v269
    %v789 = vmul.f32 %v547, %v270
    %v790 = vmul.f32 %v547, %v271
    %v791 = vmul.f32 %v547, %v272
    %v792 = vmul.f32 %v547, %v273
    %v793 = vmul.f32 %v547, %v274
    %v794 = vmul.f32 %v547, %v275
    %v795 = vmul.f32 %v547, %v276
    %v796 = vmul.f32 %v547, %v277
    %v797 = vmul.f32 %v547, %v278
    %v798 = vmul.f32 %v547, %v279
    %v799 = vmul.f32 %v547, %v280
    %v800 = vmul.f32 %v547, %v281
    %v801 = vmul.f32 %v547, %v282
    %v802 = vmul.f32 %v547, %v283
    %v803 = vmul.f32 %v547, %v284
    %v804 = vmul.f32 %v547, %v285
    %v805 = vmul.f32 %v547, %v286
    %v806 = vmul.f32 %v547, %v287
    %v807 = vstv %s28
    %v808 = vmul.f32 %v807, %v288
    %v809 = vmul.f32 %v807, %v289
    %v810 = vmul.f32 %v807, %v290
    %v811 = vmul.f32 %v807, %v291
    %v812 = vmul.f32 %v807, %v292
    %v813 = vmul.f32 %v807, %v293
    %v814 = vmul.f32 %v807, %v294
    %v815 = vmul.f32 %v807, %v295
    %v816 = vmul.f32 %v807, %v296
    %v817 = vmul.f32 %v807, %v297
    %v818 = vmul.f32 %v807, %v298
    %v819 = vmul.f32 %v807, %v299
    %v820 = vmul.f32 %v807, %v300
    %v821 = vmul.f32 %v807, %v301
    %v822 = vmul.f32 %v807, %v302
    %v823 = vmul.f32 %v807, %v303
    %v824 = vmul.f32 %v807, %v304
    %v825 = vmul.f32 %v807, %v305
    %v826 = vmul.f32 %v807, %v306
    %v827 = vmul.f32 %v807, %v307
    %v828 = vmul.f32 %v807, %v308
    %v829 = vmul.f32 %v807, %v309
    %v830 = vmul.f32 %v807, %v310
    %v831 = vmul.f32 %v807, %v311
    %v832 = vmul.f32 %v807, %v312
    %v833 = vmul.f32 %v807, %v313
    %v834 = vmul.f32 %v807, %v314
    %v835 = vmul.f32 %v807, %v315
    %v836 = vmul.f32 %v807, %v316
    %v837 = vmul.f32 %v807, %v317
    %v838 = vmul.f32 %v807, %v318
    %v839 = vmul.f32 %v807, %v319
    %v840 = vmul.f32 %v807, %v320
    %v841 = vmul.f32 %v807, %v321
    %v842 = vmul.f32 %v807, %v322
    %v843 = vmul.f32 %v807, %v323
    %v844 = vmul.f32 %v807, %v324
    %v845 = vmul.f32 %v807, %v325
    %v846 = vmul.f32 %v807, %v326
    %v847 = vmul.f32 %v807, %v327
    %v848 = vmul.f32 %v807, %v328
    %v849 = vmul.f32 %v807, %v329
    %v850 = vmul.f32 %v807, %v330
    %v851 = vmul.f32 %v807, %v331
    %v852 = vmul.f32 %v807, %v332
    %v853 = vmul.f32 %v807, %v333
    %v854 = vmul.f32 %v807, %v334
    %v855 = vmul.f32 %v807, %v335
    %v856 = vmul.f32 %v807, %v336
    %v857 = vmul.f32 %v807, %v337
    %v858 = vmul.f32 %v807, %v338
    %v859 = vmul.f32 %v807, %v339
    %v860 = vmul.f32 %v807, %v340
    %v861 = vmul.f32 %v807, %v341
    %v862 = vmul.f32 %v807, %v342
    %v863 = vmul.f32 %v807, %v343
    %v864 = vmul.f32 %v807, %v344
    %v865 = vmul.f32 %v807, %v345
    %v866 = vmul.f32 %v807, %v346
    %v867 = vmul.f32 %v807, %v347
    %v868 = vmul.f32 %v807, %v348
    %v869 = vmul.f32 %v807, %v349
    %v870 = vmul.f32 %v807, %v350
    %v871 = vmul.f32 %v807, %v351
    %v872 = vmul.f32 %v807, %v352
    %v873 = vmul.f32 %v807, %v353
    %v874 = vmul.f32 %v807, %v354
    %v875 = vmul.f32 %v807, %v355
    %v876 = vmul.f32 %v807, %v356
    %v877 = vmul.f32 %v807, %v357
    %v878 = vmul.f32 %v807, %v358
    %v879 = vmul.f32 %v807, %v359
    %v880 = vmul.f32 %v807, %v360
    %v881 = vmul.f32 %v807, %v361
    %v882 = vmul.f32 %v807, %v362
    %v883 = vmul.f32 %v807, %v363
    %v884 = vmul.f32 %v807, %v364
    %v885 = vmul.f32 %v807, %v365
    %v886 = vmul.f32 %v807, %v366
    %v887 = vmul.f32 %v807, %v367
    %v888 = vmul.f32 %v807, %v368
    %v889 = vmul.f32 %v807, %v369
    %v890 = vmul.f32 %v807, %v370
    %v891 = vmul.f32 %v807, %v371
    %v892 = vmul.f32 %v807, %v372
    %v893 = vmul.f32 %v807, %v373
    %v894 = vmul.f32 %v807, %v374
    %v895 = vmul.f32 %v807, %v375
    %v896 = vmul.f32 %v807, %v376
    %v897 = vmul.f32 %v807, %v377
    %v898 = vmul.f32 %v807, %v378
    %v899 = vmul.f32 %v807, %v379
    %v900 = vmul.f32 %v807, %v380
    %v901 = vmul.f32 %v807, %v381
    %v902 = vmul.f32 %v807, %v382
    %v903 = vmul.f32 %v807, %v383
    %v904 = vmul.f32 %v807, %v384
    %v905 = vmul.f32 %v807, %v385
    %v906 = vmul.f32 %v807, %v386
    %v907 = vmul.f32 %v807, %v387
    %v908 = vmul.f32 %v807, %v388
    %v909 = vmul.f32 %v807, %v389
    %v910 = vmul.f32 %v807, %v390
    %v911 = vmul.f32 %v807, %v391
    %v912 = vmul.f32 %v807, %v392
    %v913 = vmul.f32 %v807, %v393
    %v914 = vmul.f32 %v807, %v394
    %v915 = vmul.f32 %v807, %v395
    %v916 = vmul.f32 %v807, %v396
    %v917 = vmul.f32 %v807, %v397
    %v918 = vmul.f32 %v807, %v398
    %v919 = vmul.f32 %v807, %v399
    %v920 = vmul.f32 %v807, %v400
    %v921 = vmul.f32 %v807, %v401
    %v922 = vmul.f32 %v807, %v402
    %v923 = vmul.f32 %v807, %v403
    %v924 = vmul.f32 %v807, %v404
    %v925 = vmul.f32 %v807, %v405
    %v926 = vmul.f32 %v807, %v406
    %v927 = vmul.f32 %v807, %v407
    %v928 = vmul.f32 %v807, %v408
    %v929 = vmul.f32 %v807, %v409
    %v930 = vmul.f32 %v807, %v410
    %v931 = vmul.f32 %v807, %v411
    %v932 = vmul.f32 %v807, %v412
    %v933 = vmul.f32 %v807, %v413
    %v934 = vmul.f32 %v807, %v414
    %v935 = vmul.f32 %v807, %v415
    %v936 = vmul.f32 %v807, %v416
    %v937 = vmul.f32 %v807, %v417
    %v938 = vmul.f32 %v807, %v418
    %v939 = vmul.f32 %v807, %v419
    %v940 = vmul.f32 %v807, %v420
    %v941 = vmul.f32 %v807, %v421
    %v942 = vmul.f32 %v807, %v422
    %v943 = vmul.f32 %v807, %v423
    %v944 = vmul.f32 %v807, %v424
    %v945 = vmul.f32 %v807, %v425
    %v946 = vmul.f32 %v807, %v426
    %v947 = vmul.f32 %v807, %v427
    %v948 = vmul.f32 %v807, %v428
    %v949 = vmul.f32 %v807, %v429
    %v950 = vmul.f32 %v807, %v430
    %v951 = vmul.f32 %v807, %v431
    %v952 = vmul.f32 %v807, %v432
    %v953 = vmul.f32 %v807, %v433
    %v954 = vmul.f32 %v807, %v434
    %v955 = vmul.f32 %v807, %v435
    %v956 = vmul.f32 %v807, %v436
    %v957 = vmul.f32 %v807, %v437
    %v958 = vmul.f32 %v807, %v438
    %v959 = vmul.f32 %v807, %v439
    %v960 = vmul.f32 %v807, %v440
    %v961 = vmul.f32 %v807, %v441
    %v962 = vmul.f32 %v807, %v442
    %v963 = vmul.f32 %v807, %v443
    %v964 = vmul.f32 %v807, %v444
    %v965 = vmul.f32 %v807, %v445
    %v966 = vmul.f32 %v807, %v446
    %v967 = vmul.f32 %v807, %v447
    %v968 = vmul.f32 %v807, %v448
    %v969 = vmul.f32 %v807, %v449
    %v970 = vmul.f32 %v807, %v450
    %v971 = vmul.f32 %v807, %v451
    %v972 = vmul.f32 %v807, %v452
    %v973 = vmul.f32 %v807, %v453
    %v974 = vmul.f32 %v807, %v454
    %v975 = vmul.f32 %v807, %v455
    %v976 = vmul.f32 %v807, %v456
    %v977 = vmul.f32 %v807, %v457
    %v978 = vmul.f32 %v807, %v458
    %v979 = vmul.f32 %v807, %v459
    %v980 = vmul.f32 %v807, %v460
    %v981 = vmul.f32 %v807, %v461
    %v982 = vmul.f32 %v807, %v462
    %v983 = vmul.f32 %v807, %v463
    %v984 = vmul.f32 %v807, %v464
    %v985 = vmul.f32 %v807, %v465
    %v986 = vmul.f32 %v807, %v466
    %v987 = vmul.f32 %v807, %v467
    %v988 = vmul.f32 %v807, %v468
    %v989 = vmul.f32 %v807, %v469
    %v990 = vmul.f32 %v807, %v470
    %v991 = vmul.f32 %v807, %v471
    %v992 = vmul.f32 %v807, %v472
    %v993 = vmul.f32 %v807, %v473
    %v994 = vmul.f32 %v807, %v474
    %v995 = vmul.f32 %v807, %v475
    %v996 = vmul.f32 %v807, %v476
    %v997 = vmul.f32 %v807, %v477
    %v998 = vmul.f32 %v807, %v478
    %v999 = vmul.f32 %v807, %v479
    %v1000 = vmul.f32 %v807, %v480
    %v1001 = vmul.f32 %v807, %v481
    %v1002 = vmul.f32 %v807, %v482
    %v1003 = vmul.f32 %v807, %v483
    %v1004 = vmul.f32 %v807, %v484
    %v1005 = vmul.f32 %v807, %v485
    %v1006 = vmul.f32 %v807, %v486
    %v1007 = vmul.f32 %v807, %v487
    %v1008 = vmul.f32 %v807, %v488
    %v1009 = vmul.f32 %v807, %v489
    %v1010 = vmul.f32 %v807, %v490
    %v1011 = vmul.f32 %v807, %v491
    %v1012 = vmul.f32 %v807, %v492
    %v1013 = vmul.f32 %v807, %v493
    %v1014 = vmul.f32 %v807, %v494
    %v1015 = vmul.f32 %v807, %v495
    %v1016 = vmul.f32 %v807, %v496
    %v1017 = vmul.f32 %v807, %v497
    %v1018 = vmul.f32 %v807, %v498
    %v1019 = vmul.f32 %v807, %v499
    %v1020 = vmul.f32 %v807, %v500
    %v1021 = vmul.f32 %v807, %v501
    %v1022 = vmul.f32 %v807, %v502
    %v1023 = vmul.f32 %v807, %v503
    %v1024 = vmul.f32 %v807, %v504
    %v1025 = vmul.f32 %v807, %v505
    %v1026 = vmul.f32 %v807, %v506
    %v1027 = vmul.f32 %v807, %v507
    %v1028 = vmul.f32 %v807, %v508
    %v1029 = vmul.f32 %v807, %v509
    %v1030 = vmul.f32 %v807, %v510
    %v1031 = vmul.f32 %v807, %v511
    %v1032 = vmul.f32 %v807, %v512
    %v1033 = vmul.f32 %v807, %v513
    %v1034 = vmul.f32 %v807, %v514
    %v1035 = vmul.f32 %v807, %v515
    %v1036 = vmul.f32 %v807, %v516
    %v1037 = vmul.f32 %v807, %v517
    %v1038 = vmul.f32 %v807, %v518
    %v1039 = vmul.f32 %v807, %v519
    %v1040 = vmul.f32 %v807, %v520
    %v1041 = vmul.f32 %v807, %v521
    %v1042 = vmul.f32 %v807, %v522
    %v1043 = vmul.f32 %v807, %v523
    %v1044 = vmul.f32 %v807, %v524
    %v1045 = vmul.f32 %v807, %v525
    %v1046 = vmul.f32 %v807, %v526
    %v1047 = vmul.f32 %v807, %v527
    %v1048 = vmul.f32 %v807, %v528
    %v1049 = vmul.f32 %v807, %v529
    %v1050 = vmul.f32 %v807, %v530
    %v1051 = vmul.f32 %v807, %v531
    %v1052 = vmul.f32 %v807, %v532
    %v1053 = vmul.f32 %v807, %v533
    %v1054 = vmul.f32 %v807, %v534
    %v1055 = vmul.f32 %v807, %v535
    %v1056 = vmul.f32 %v807, %v536
    %v1057 = vmul.f32 %v807, %v537
    %v1058 = vmul.f32 %v807, %v538
    %v1059 = vmul.f32 %v807, %v539
    %v1060 = vmul.f32 %v807, %v540
    %v1061 = vmul.f32 %v807, %v541
    %v1062 = vmul.f32 %v807, %v542
    %v1063 = vmul.f32 %v807, %v543
    %v1064 = vmul.f32 %v807, %v544
    %v1065 = vmul.f32 %v807, %v545
    %v1066 = vmul.f32 %v807, %v546
    %v1067 = vadd.f32 %v548, %v808
    %v1068 = vadd.f32 %v549, %v809
    %v1069 = vadd.f32 %v550, %v810
    %v1070 = vadd.f32 %v551, %v811
    %v1071 = vadd.f32 %v552, %v812
    %v1072 = vadd.f32 %v553, %v813
    %v1073 = vadd.f32 %v554, %v814
    %v1074 = vadd.f32 %v555, %v815
    %v1075 = vadd.f32 %v556, %v816
    %v1076 = vadd.f32 %v557, %v817
    %v1077 = vadd.f32 %v558, %v818
    %v1078 = vadd.f32 %v559, %v819
    %v1079 = vadd.f32 %v560, %v820
    %v1080 = vadd.f32 %v561, %v821
    %v1081 = vadd.f32 %v562, %v822
    %v1082 = vadd.f32 %v563, %v823
    %v1083 = vadd.f32 %v564, %v824
    %v1084 = vadd.f32 %v565, %v825
    %v1085 = vadd.f32 %v566, %v826
    %v1086 = vadd.f32 %v567, %v827
    %v1087 = vadd.f32 %v568, %v828
    %v1088 = vadd.f32 %v569, %v829
    %v1089 = vadd.f32 %v570, %v830
    %v1090 = vadd.f32 %v571, %v831
    %v1091 = vadd.f32 %v572, %v832
    %v1092 = vadd.f32 %v573, %v833
    %v1093 = vadd.f32 %v574, %v834
    %v1094 = vadd.f32 %v575, %v835
    %v1095 = vadd.f32 %v576, %v836
    %v1096 = vadd.f32 %v577, %v837
    %v1097 = vadd.f32 %v578, %v838
    %v1098 = vadd.f32 %v579, %v839
    %v1099 = vadd.f32 %v580, %v840
    %v1100 = vadd.f32 %v581, %v841
    %v1101 = vadd.f32 %v582, %v842
    %v1102 = vadd.f32 %v583, %v843
    %v1103 = vadd.f32 %v584, %v844
    %v1104 = vadd.f32 %v585, %v845
    %v1105 = vadd.f32 %v586, %v846
    %v1106 = vadd.f32 %v587, %v847
    %v1107 = vadd.f32 %v588, %v848
    %v1108 = vadd.f32 %v589, %v849
    %v1109 = vadd.f32 %v590, %v850
    %v1110 = vadd.f32 %v591, %v851
    %v1111 = vadd.f32 %v592, %v852
    %v1112 = vadd.f32 %v593, %v853
    %v1113 = vadd.f32 %v594, %v854
    %v1114 = vadd.f32 %v595, %v855
    %v1115 = vadd.f32 %v596, %v856
    %v1116 = vadd.f32 %v597, %v857
    %v1117 = vadd.f32 %v598, %v858
    %v1118 = vadd.f32 %v599, %v859
    %v1119 = vadd.f32 %v600, %v860
    %v1120 = vadd.f32 %v601, %v861
    %v1121 = vadd.f32 %v602, %v862
    %v1122 = vadd.f32 %v603, %v863
    %v1123 = vadd.f32 %v604, %v864
    %v1124 = vadd.f32 %v605, %v865
    %v1125 = vadd.f32 %v606, %v866
    %v1126 = vadd.f32 %v607, %v867
    %v1127 = vadd.f32 %v608, %v868
    %v1128 = vadd.f32 %v609, %v869
    %v1129 = vadd.f32 %v610, %v870
    %v1130 = vadd.f32 %v611, %v871
    %v1131 = vadd.f32 %v612, %v872
    %v1132 = vadd.f32 %v613, %v873
    %v1133 = vadd.f32 %v614, %v874
    %v1134 = vadd.f32 %v615, %v875
    %v1135 = vadd.f32 %v616, %v876
    %v1136 = vadd.f32 %v617, %v877
    %v1137 = vadd.f32 %v618, %v878
    %v1138 = vadd.f32 %v619, %v879
    %v1139 = vadd.f32 %v620, %v880
    %v1140 = vadd.f32 %v621, %v881
    %v1141 = vadd.f32 %v622, %v882
    %v1142 = vadd.f32 %v623, %v883
    %v1143 = vadd.f32 %v624, %v884
    %v1144 = vadd.f32 %v625, %v885
    %v1145 = vadd.f32 %v626, %v886
    %v1146 = vadd.f32 %v627, %v887
    %v1147 = vadd.f32 %v628, %v888
    %v1148 = vadd.f32 %v629, %v889
    %v1149 = vadd.f32 %v630, %v890
    %v1150 = vadd.f32 %v631, %v891
    %v1151 = vadd.f32 %v632, %v892
    %v1152 = vadd.f32 %v633, %v893
    %v1153 = vadd.f32 %v634, %v894
    %v1154 = vadd.f32 %v635, %v895
    %v1155 = vadd.f32 %v636, %v896
    %v1156 = vadd.f32 %v637, %v897
    %v1157 = vadd.f32 %v638, %v898
    %v1158 = vadd.f32 %v639, %v899
    %v1159 = vadd.f32 %v640, %v900
    %v1160 = vadd.f32 %v641, %v901
    %v1161 = vadd.f32 %v642, %v902
    %v1162 = vadd.f32 %v643, %v903
    %v1163 = vadd.f32 %v644, %v904
    %v1164 = vadd.f32 %v645, %v905
    %v1165 = vadd.f32 %v646, %v906
    %v1166 = vadd.f32 %v647, %v907
    %v1167 = vadd.f32 %v648, %v908
    %v1168 = vadd.f32 %v649, %v909
    %v1169 = vadd.f32 %v650, %v910
    %v1170 = vadd.f32 %v651, %v911
    %v1171 = vadd.f32 %v652, %v912
    %v1172 = vadd.f32 %v653, %v913
    %v1173 = vadd.f32 %v654, %v914
    %v1174 = vadd.f32 %v655, %v915
    %v1175 = vadd.f32 %v656, %v916
    %v1176 = vadd.f32 %v657, %v917
    %v1177 = vadd.f32 %v658, %v918
    %v1178 = vadd.f32 %v659, %v919
    %v1179 = vadd.f32 %v660, %v920
    %v1180 = vadd.f32 %v661, %v921
    %v1181 = vadd.f32 %v662, %v922
    %v1182 = vadd.f32 %v663, %v923
    %v1183 = vadd.f32 %v664, %v924
    %v1184 = vadd.f32 %v665, %v925
    %v1185 = vadd.f32 %v666, %v926
    %v1186 = vadd.f32 %v667, %v927
    %v1187 = vadd.f32 %v668, %v928
    %v1188 = vadd.f32 %v669, %v929
    %v1189 = vadd.f32 %v670, %v930
    %v1190 = vadd.f32 %v671, %v931
    %v1191 = vadd.f32 %v672, %v932
    %v1192 = vadd.f32 %v673, %v933
    %v1193 = vadd.f32 %v674, %v934
    %v1194 = vadd.f32 %v675, %v935
    %v1195 = vadd.f32 %v676, %v936
    %v1196 = vadd.f32 %v677, %v937
    %v1197 = vadd.f32 %v678, %v938
    %v1198 = vadd.f32 %v679, %v939
    %v1199 = vadd.f32 %v680, %v940
    %v1200 = vadd.f32 %v681, %v941
    %v1201 = vadd.f32 %v682, %v942
    %v1202 = vadd.f32 %v683, %v943
    %v1203 = vadd.f32 %v684, %v944
    %v1204 = vadd.f32 %v685, %v945
    %v1205 = vadd.f32 %v686, %v946
    %v1206 = vadd.f32 %v687, %v947
    %v1207 = vadd.f32 %v688, %v948
    %v1208 = vadd.f32 %v689, %v949
    %v1209 = vadd.f32 %v690, %v950
    %v1210 = vadd.f32 %v691, %v951
    %v1211 = vadd.f32 %v692, %v952
    %v1212 = vadd.f32 %v693, %v953
    %v1213 = vadd.f32 %v694, %v954
    %v1214 = vadd.f32 %v695, %v955
    %v1215 = vadd.f32 %v696, %v956
    %v1216 = vadd.f32 %v697, %v957
    %v1217 = vadd.f32 %v698, %v958
    %v1218 = vadd.f32 %v699, %v959
    %v1219 = vadd.f32 %v700, %v960
    %v1220 = vadd.f32 %v701, %v961
    %v1221 = vadd.f32 %v702, %v962
    %v1222 = vadd.f32 %v703, %v963
    %v1223 = vadd.f32 %v704, %v964
    %v1224 = vadd.f32 %v705, %v965
    %v1225 = vadd.f32 %v706, %v966
    %v1226 = vadd.f32 %v707, %v967
    %v1227 = vadd.f32 %v708, %v968
    %v1228 = vadd.f32 %v709, %v969
    %v1229 = vadd.f32 %v710, %v970
    %v1230 = vadd.f32 %v711, %v971
    %v1231 = vadd.f32 %v712, %v972
    %v1232 = vadd.f32 %v713, %v973
    %v1233 = vadd.f32 %v714, %v974
    %v1234 = vadd.f32 %v715, %v975
    %v1235 = vadd.f32 %v716, %v976
    %v1236 = vadd.f32 %v717, %v977
    %v1237 = vadd.f32 %v718, %v978
    %v1238 = vadd.f32 %v719, %v979
    %v1239 = vadd.f32 %v720, %v980
    %v1240 = vadd.f32 %v721, %v981
    %v1241 = vadd.f32 %v722, %v982
    %v1242 = vadd.f32 %v723, %v983
    %v1243 = vadd.f32 %v724, %v984
    %v1244 = vadd.f32 %v725, %v985
    %v1245 = vadd.f32 %v726, %v986
    %v1246 = vadd.f32 %v727, %v987
    %v1247 = vadd.f32 %v728, %v988
    %v1248 = vadd.f32 %v729, %v989
    %v1249 = vadd.f32 %v730, %v990
    %v1250 = vadd.f32 %v731, %v991
    %v1251 = vadd.f32 %v732, %v992
    %v1252 = vadd.f32 %v733, %v993
    %v1253 = vadd.f32 %v734, %v994
    %v1254 = vadd.f32 %v735, %v995
    %v1255 = vadd.f32 %v736, %v996
    %v1256 = vadd.f32 %v737, %v997
    %v1257 = vadd.f32 %v738, %v998
    %v1258 = vadd.f32 %v739, %v999
    %v1259 = vadd.f32 %v740, %v1000
    %v1260 = vadd.f32 %v741, %v1001
    %v1261 = vadd.f32 %v742, %v1002
    %v1262 = vadd.f32 %v743, %v1003
    %v1263 = vadd.f32 %v744, %v1004
    %v1264 = vadd.f32 %v745, %v1005
    %v1265 = vadd.f32 %v746, %v1006
    %v1266 = vadd.f32 %v747, %v1007
    %v1267 = vadd.f32 %v748, %v1008
    %v1268 = vadd.f32 %v749, %v1009
    %v1269 = vadd.f32 %v750, %v1010
    %v1270 = vadd.f32 %v751, %v1011
    %v1271 = vadd.f32 %v752, %v1012
    %v1272 = vadd.f32 %v753, %v1013
    %v1273 = vadd.f32 %v754, %v1014
    %v1274 = vadd.f32 %v755, %v1015
    %v1275 = vadd.f32 %v756, %v1016
    %v1276 = vadd.f32 %v757, %v1017
    %v1277 = vadd.f32 %v758, %v1018
    %v1278 = vadd.f32 %v759, %v1019
    %v1279 = vadd.f32 %v760, %v1020
    %v1280 = vadd.f32 %v761, %v1021
    %v1281 = vadd.f32 %v762, %v1022
    %v1282 = vadd.f32 %v763, %v1023
    %v1283 = vadd.f32 %v764, %v1024
    %v1284 = vadd.f32 %v765, %v1025
    %v1285 = vadd.f32 %v766, %v1026
    %v1286 = vadd.f32 %v767, %v1027
    %v1287 = vadd.f32 %v768, %v1028
    %v1288 = vadd.f32 %v769, %v1029
    %v1289 = vadd.f32 %v770, %v1030
    %v1290 = vadd.f32 %v771, %v1031
    %v1291 = vadd.f32 %v772, %v1032
    %v1292 = vadd.f32 %v773, %v1033
    %v1293 = vadd.f32 %v774, %v1034
    %v1294 = vadd.f32 %v775, %v1035
    %v1295 = vadd.f32 %v776, %v1036
    %v1296 = vadd.f32 %v777, %v1037
    %v1297 = vadd.f32 %v778, %v1038
    %v1298 = vadd.f32 %v779, %v1039
    %v1299 = vadd.f32 %v780, %v1040
    %v1300 = vadd.f32 %v781, %v1041
    %v1301 = vadd.f32 %v782, %v1042
    %v1302 = vadd.f32 %v783, %v1043
    %v1303 = vadd.f32 %v784, %v1044
    %v1304 = vadd.f32 %v785, %v1045
    %v1305 = vadd.f32 %v786, %v1046
    %v1306 = vadd.f32 %v787, %v1047
    %v1307 = vadd.f32 %v788, %v1048
    %v1308 = vadd.f32 %v789, %v1049
    %v1309 = vadd.f32 %v790, %v1050
    %v1310 = vadd.f32 %v791, %v1051
    %v1311 = vadd.f32 %v792, %v1052
    %v1312 = vadd.f32 %v793, %v1053
    %v1313 = vadd.f32 %v794, %v1054
    %v1314 = vadd.f32 %v795, %v1055
    %v1315 = vadd.f32 %v796, %v1056
    %v1316 = vadd.f32 %v797, %v1057
    %v1317 = vadd.f32 %v798, %v1058
    %v1318 = vadd.f32 %v799, %v1059
    %v1319 = vadd.f32 %v800, %v1060
    %v1320 = vadd.f32 %v801, %v1061
    %v1321 = vadd.f32 %v802, %v1062
    %v1322 = vadd.f32 %v803, %v1063
    %v1323 = vadd.f32 %v804, %v1064
    %v1324 = vadd.f32 %v805, %v1065
    %v1325 = vadd.f32 %v806, %v1066
    %1326 = vst [vmem:[%s3] sm:$0xff] %v1067
    %1327 = vst [vmem:[%s3 + $0x8] sm:$0xff] %v1068
    %1328 = vst [vmem:[%s3 + $0x10] sm:$0xff] %v1069
    %1329 = vst [vmem:[%s3 + $0x18] sm:$0xff] %v1070
    %1330 = vst [vmem:[%s3 + $0x20] sm:$0xff] %v1071
    %1331 = vst [vmem:[%s3 + $0x28] sm:$0xff] %v1072
    %1332 = vst [vmem:[%s3 + $0x30] sm:$0xff] %v1073
    %1333 = vst [vmem:[%s3 + $0x38] sm:$0xff] %v1074
    %1334 = vst [vmem:[%s3 + $0x40] sm:$0xff] %v1075
    %1335 = vst [vmem:[%s3 + $0x48] sm:$0xff] %v1076
    %1336 = vst [vmem:[%s3 + $0x50] sm:$0xff] %v1077
    %1337 = vst [vmem:[%s3 + $0x58] sm:$0xff] %v1078
    %1338 = vst [vmem:[%s3 + $0x60] sm:$0xff] %v1079
    %1339 = vst [vmem:[%s3 + $0x68] sm:$0xff] %v1080
    %1340 = vst [vmem:[%s3 + $0x70] sm:$0xff] %v1081
    %1341 = vst [vmem:[%s3 + $0x78] sm:$0xff] %v1082
    %1342 = vst [vmem:[%s3 + $0x80] sm:$0xff] %v1083
    %1343 = vst [vmem:[%s3 + $0x88] sm:$0xff] %v1084
    %1344 = vst [vmem:[%s3 + $0x90] sm:$0xff] %v1085
    %1345 = vst [vmem:[%s3 + $0x98] sm:$0xff] %v1086
    %1346 = vst [vmem:[%s3 + $0xa0] sm:$0xff] %v1087
    %1347 = vst [vmem:[%s3 + $0xa8] sm:$0xff] %v1088
    %1348 = vst [vmem:[%s3 + $0xb0] sm:$0xff] %v1089
    %1349 = vst [vmem:[%s3 + $0xb8] sm:$0xff] %v1090
    %1350 = vst [vmem:[%s3 + $0xc0] sm:$0xff] %v1091
    %1351 = vst [vmem:[%s3 + $0xc8] sm:$0xff] %v1092
    %1352 = vst [vmem:[%s3 + $0xd0] sm:$0xff] %v1093
    %1353 = vst [vmem:[%s3 + $0xd8] sm:$0xff] %v1094
    %1354 = vst [vmem:[%s3 + $0xe0] sm:$0xff] %v1095
    %1355 = vst [vmem:[%s3 + $0xe8] sm:$0xff] %v1096
    %1356 = vst [vmem:[%s3 + $0xf0] sm:$0xff] %v1097
    %1357 = vst [vmem:[%s3 + $0xf8] sm:$0xff] %v1098
    %1358 = vst [vmem:[%s3 + $0x100] sm:$0xff] %v1099
    %1359 = vst [vmem:[%s3 + $0x108] sm:$0xff] %v1100
    %1360 = vst [vmem:[%s3 + $0x110] sm:$0xff] %v1101
    %1361 = vst [vmem:[%s3 + $0x118] sm:$0xff] %v1102
    %1362 = vst [vmem:[%s3 + $0x120] sm:$0xff] %v1103
    %1363 = vst [vmem:[%s3 + $0x128] sm:$0xff] %v1104
    %1364 = vst [vmem:[%s3 + $0x130] sm:$0xff] %v1105
    %1365 = vst [vmem:[%s3 + $0x138] sm:$0xff] %v1106
    %1366 = vst [vmem:[%s3 + $0x140] sm:$0xff] %v1107
    %1367 = vst [vmem:[%s3 + $0x148] sm:$0xff] %v1108
    %1368 = vst [vmem:[%s3 + $0x150] sm:$0xff] %v1109
    %1369 = vst [vmem:[%s3 + $0x158] sm:$0xff] %v1110
    %1370 = vst [vmem:[%s3 + $0x160] sm:$0xff] %v1111
    %1371 = vst [vmem:[%s3 + $0x168] sm:$0xff] %v1112
    %1372 = vst [vmem:[%s3 + $0x170] sm:$0xff] %v1113
    %1373 = vst [vmem:[%s3 + $0x178] sm:$0xff] %v1114
    %1374 = vst [vmem:[%s3 + $0x180] sm:$0xff] %v1115
    %1375 = vst [vmem:[%s3 + $0x188] sm:$0xff] %v1116
    %1376 = vst [vmem:[%s3 + $0x190] sm:$0xff] %v1117
    %1377 = vst [vmem:[%s3 + $0x198] sm:$0xff] %v1118
    %1378 = vst [vmem:[%s3 + $0x1a0] sm:$0xff] %v1119
    %1379 = vst [vmem:[%s3 + $0x1a8] sm:$0xff] %v1120
    %1380 = vst [vmem:[%s3 + $0x1b0] sm:$0xff] %v1121
    %1381 = vst [vmem:[%s3 + $0x1b8] sm:$0xff] %v1122
    %1382 = vst [vmem:[%s3 + $0x1c0] sm:$0xff] %v1123
    %1383 = vst [vmem:[%s3 + $0x1c8] sm:$0xff] %v1124
    %1384 = vst [vmem:[%s3 + $0x1d0] sm:$0xff] %v1125
    %1385 = vst [vmem:[%s3 + $0x1d8] sm:$0xff] %v1126
    %1386 = vst [vmem:[%s3 + $0x1e0] sm:$0xff] %v1127
    %1387 = vst [vmem:[%s3 + $0x1e8] sm:$0xff] %v1128
    %1388 = vst [vmem:[%s3 + $0x1f0] sm:$0xff] %v1129
    %1389 = vst [vmem:[%s3 + $0x1f8] sm:$0xff] %v1130
    %1390 = vst [vmem:[%s3 + $0x200] sm:$0xff] %v1131
    %1391 = vst [vmem:[%s3 + $0x208] sm:$0xff] %v1132
    %1392 = vst [vmem:[%s3 + $0x210] sm:$0xff] %v1133
    %1393 = vst [vmem:[%s3 + $0x218] sm:$0xff] %v1134
    %1394 = vst [vmem:[%s3 + $0x220] sm:$0xff] %v1135
    %1395 = vst [vmem:[%s3 + $0x228] sm:$0xff] %v1136
    %1396 = vst [vmem:[%s3 + $0x230] sm:$0xff] %v1137
    %1397 = vst [vmem:[%s3 + $0x238] sm:$0xff] %v1138
    %1398 = vst [vmem:[%s3 + $0x240] sm:$0xff] %v1139
    %1399 = vst [vmem:[%s3 + $0x248] sm:$0xff] %v1140
    %1400 = vst [vmem:[%s3 + $0x250] sm:$0xff] %v1141
    %1401 = vst [vmem:[%s3 + $0x258] sm:$0xff] %v1142
    %1402 = vst [vmem:[%s3 + $0x260] sm:$0xff] %v1143
    %1403 = vst [vmem:[%s3 + $0x268] sm:$0xff] %v1144
    %1404 = vst [vmem:[%s3 + $0x270] sm:$0xff] %v1145
    %1405 = vst [vmem:[%s3 + $0x278] sm:$0xff] %v1146
    %1406 = vst [vmem:[%s3 + $0x280] sm:$0xff] %v1147
    %1407 = vst [vmem:[%s3 + $0x288] sm:$0xff] %v1148
    %1408 = vst [vmem:[%s3 + $0x290] sm:$0xff] %v1149
    %1409 = vst [vmem:[%s3 + $0x298] sm:$0xff] %v1150
    %1410 = vst [vmem:[%s3 + $0x2a0] sm:$0xff] %v1151
    %1411 = vst [vmem:[%s3 + $0x2a8] sm:$0xff] %v1152
    %1412 = vst [vmem:[%s3 + $0x2b0] sm:$0xff] %v1153
    %1413 = vst [vmem:[%s3 + $0x2b8] sm:$0xff] %v1154
    %1414 = vst [vmem:[%s3 + $0x2c0] sm:$0xff] %v1155
    %1415 = vst [vmem:[%s3 + $0x2c8] sm:$0xff] %v1156
    %1416 = vst [vmem:[%s3 + $0x2d0] sm:$0xff] %v1157
    %1417 = vst [vmem:[%s3 + $0x2d8] sm:$0xff] %v1158
    %1418 = vst [vmem:[%s3 + $0x2e0] sm:$0xff] %v1159
    %1419 = vst [vmem:[%s3 + $0x2e8] sm:$0xff] %v1160
    %1420 = vst [vmem:[%s3 + $0x2f0] sm:$0xff] %v1161
    %1421 = vst [vmem:[%s3 + $0x2f8] sm:$0xff] %v1162
    %1422 = vst [vmem:[%s3 + $0x300] sm:$0xff] %v1163
    %1423 = vst [vmem:[%s3 + $0x308] sm:$0xff] %v1164
    %1424 = vst [vmem:[%s3 + $0x310] sm:$0xff] %v1165
    %1425 = vst [vmem:[%s3 + $0x318] sm:$0xff] %v1166
    %1426 = vst [vmem:[%s3 + $0x320] sm:$0xff] %v1167
    %1427 = vst [vmem:[%s3 + $0x328] sm:$0xff] %v1168
    %1428 = vst [vmem:[%s3 + $0x330] sm:$0xff] %v1169
    %1429 = vst [vmem:[%s3 + $0x338] sm:$0xff] %v1170
    %1430 = vst [vmem:[%s3 + $0x340] sm:$0xff] %v1171
    %1431 = vst [vmem:[%s3 + $0x348] sm:$0xff] %v1172
    %1432 = vst [vmem:[%s3 + $0x350] sm:$0xff] %v1173
    %1433 = vst [vmem:[%s3 + $0x358] sm:$0xff] %v1174
    %1434 = vst [vmem:[%s3 + $0x360] sm:$0xff] %v1175
    %1435 = vst [vmem:[%s3 + $0x368] sm:$0xff] %v1176
    %1436 = vst [vmem:[%s3 + $0x370] sm:$0xff] %v1177
    %1437 = vst [vmem:[%s3 + $0x378] sm:$0xff] %v1178
    %1438 = vst [vmem:[%s3 + $0x380] sm:$0xff] %v1179
    %1439 = vst [vmem:[%s3 + $0x388] sm:$0xff] %v1180
    %1440 = vst [vmem:[%s3 + $0x390] sm:$0xff] %v1181
    %1441 = vst [vmem:[%s3 + $0x398] sm:$0xff] %v1182
    %1442 = vst [vmem:[%s3 + $0x3a0] sm:$0xff] %v1183
    %1443 = vst [vmem:[%s3 + $0x3a8] sm:$0xff] %v1184
    %1444 = vst [vmem:[%s3 + $0x3b0] sm:$0xff] %v1185
    %1445 = vst [vmem:[%s3 + $0x3b8] sm:$0xff] %v1186
    %1446 = vst [vmem:[%s3 + $0x3c0] sm:$0xff] %v1187
    %1447 = vst [vmem:[%s3 + $0x3c8] sm:$0xff] %v1188
    %1448 = vst [vmem:[%s3 + $0x3d0] sm:$0xff] %v1189
    %1449 = vst [vmem:[%s3 + $0x3d8] sm:$0xff] %v1190
    %1450 = vst [vmem:[%s3 + $0x3e0] sm:$0xff] %v1191
    %1451 = vst [vmem:[%s3 + $0x3e8] sm:$0xff] %v1192
    %1452 = vst [vmem:[%s3 + $0x3f0] sm:$0xff] %v1193
    %1453 = vst [vmem:[%s3 + $0x3f8] sm:$0xff] %v1194
    %1454 = vst [vmem:[%s3 + $0x400] sm:$0xff] %v1195
    %1455 = vst [vmem:[%s3 + $0x408] sm:$0xff] %v1196
    %1456 = vst [vmem:[%s3 + $0x410] sm:$0xff] %v1197
    %1457 = vst [vmem:[%s3 + $0x418] sm:$0xff] %v1198
    %1458 = vst [vmem:[%s3 + $0x420] sm:$0xff] %v1199
    %1459 = vst [vmem:[%s3 + $0x428] sm:$0xff] %v1200
    %1460 = vst [vmem:[%s3 + $0x430] sm:$0xff] %v1201
    %1461 = vst [vmem:[%s3 + $0x438] sm:$0xff] %v1202
    %1462 = vst [vmem:[%s3 + $0x440] sm:$0xff] %v1203
    %1463 = vst [vmem:[%s3 + $0x448] sm:$0xff] %v1204
    %1464 = vst [vmem:[%s3 + $0x450] sm:$0xff] %v1205
    %1465 = vst [vmem:[%s3 + $0x458] sm:$0xff] %v1206
    %1466 = vst [vmem:[%s3 + $0x460] sm:$0xff] %v1207
    %1467 = vst [vmem:[%s3 + $0x468] sm:$0xff] %v1208
    %1468 = vst [vmem:[%s3 + $0x470] sm:$0xff] %v1209
    %1469 = vst [vmem:[%s3 + $0x478] sm:$0xff] %v1210
    %1470 = vst [vmem:[%s3 + $0x480] sm:$0xff] %v1211
    %1471 = vst [vmem:[%s3 + $0x488] sm:$0xff] %v1212
    %1472 = vst [vmem:[%s3 + $0x490] sm:$0xff] %v1213
    %1473 = vst [vmem:[%s3 + $0x498] sm:$0xff] %v1214
    %1474 = vst [vmem:[%s3 + $0x4a0] sm:$0xff] %v1215
    %1475 = vst [vmem:[%s3 + $0x4a8] sm:$0xff] %v1216
    %1476 = vst [vmem:[%s3 + $0x4b0] sm:$0xff] %v1217
    %1477 = vst [vmem:[%s3 + $0x4b8] sm:$0xff] %v1218
    %1478 = vst [vmem:[%s3 + $0x4c0] sm:$0xff] %v1219
    %1479 = vst [vmem:[%s3 + $0x4c8] sm:$0xff] %v1220
    %1480 = vst [vmem:[%s3 + $0x4d0] sm:$0xff] %v1221
    %1481 = vst [vmem:[%s3 + $0x4d8] sm:$0xff] %v1222
    %1482 = vst [vmem:[%s3 + $0x4e0] sm:$0xff] %v1223
    %1483 = vst [vmem:[%s3 + $0x4e8] sm:$0xff] %v1224
    %1484 = vst [vmem:[%s3 + $0x4f0] sm:$0xff] %v1225
    %1485 = vst [vmem:[%s3 + $0x4f8] sm:$0xff] %v1226
    %1486 = vst [vmem:[%s3 + $0x500] sm:$0xff] %v1227
    %1487 = vst [vmem:[%s3 + $0x508] sm:$0xff] %v1228
    %1488 = vst [vmem:[%s3 + $0x510] sm:$0xff] %v1229
    %1489 = vst [vmem:[%s3 + $0x518] sm:$0xff] %v1230
    %1490 = vst [vmem:[%s3 + $0x520] sm:$0xff] %v1231
    %1491 = vst [vmem:[%s3 + $0x528] sm:$0xff] %v1232
    %1492 = vst [vmem:[%s3 + $0x530] sm:$0xff] %v1233
    %1493 = vst [vmem:[%s3 + $0x538] sm:$0xff] %v1234
    %1494 = vst [vmem:[%s3 + $0x540] sm:$0xff] %v1235
    %1495 = vst [vmem:[%s3 + $0x548] sm:$0xff] %v1236
    %1496 = vst [vmem:[%s3 + $0x550] sm:$0xff] %v1237
    %1497 = vst [vmem:[%s3 + $0x558] sm:$0xff] %v1238
    %1498 = vst [vmem:[%s3 + $0x560] sm:$0xff] %v1239
    %1499 = vst [vmem:[%s3 + $0x568] sm:$0xff] %v1240
    %1500 = vst [vmem:[%s3 + $0x570] sm:$0xff] %v1241
    %1501 = vst [vmem:[%s3 + $0x578] sm:$0xff] %v1242
    %1502 = vst [vmem:[%s3 + $0x580] sm:$0xff] %v1243
    %1503 = vst [vmem:[%s3 + $0x588] sm:$0xff] %v1244
    %1504 = vst [vmem:[%s3 + $0x590] sm:$0xff] %v1245
    %1505 = vst [vmem:[%s3 + $0x598] sm:$0xff] %v1246
    %1506 = vst [vmem:[%s3 + $0x5a0] sm:$0xff] %v1247
    %1507 = vst [vmem:[%s3 + $0x5a8] sm:$0xff] %v1248
    %1508 = vst [vmem:[%s3 + $0x5b0] sm:$0xff] %v1249
    %1509 = vst [vmem:[%s3 + $0x5b8] sm:$0xff] %v1250
    %1510 = vst [vmem:[%s3 + $0x5c0] sm:$0xff] %v1251
    %1511 = vst [vmem:[%s3 + $0x5c8] sm:$0xff] %v1252
    %1512 = vst [vmem:[%s3 + $0x5d0] sm:$0xff] %v1253
    %1513 = vst [vmem:[%s3 + $0x5d8] sm:$0xff] %v1254
    %1514 = vst [vmem:[%s3 + $0x5e0] sm:$0xff] %v1255
    %1515 = vst [vmem:[%s3 + $0x5e8] sm:$0xff] %v1256
    %1516 = vst [vmem:[%s3 + $0x5f0] sm:$0xff] %v1257
    %1517 = vst [vmem:[%s3 + $0x5f8] sm:$0xff] %v1258
    %1518 = vst [vmem:[%s3 + $0x600] sm:$0xff] %v1259
    %1519 = vst [vmem:[%s3 + $0x608] sm:$0xff] %v1260
    %1520 = vst [vmem:[%s3 + $0x610] sm:$0xff] %v1261
    %1521 = vst [vmem:[%s3 + $0x618] sm:$0xff] %v1262
    %1522 = vst [vmem:[%s3 + $0x620] sm:$0xff] %v1263
    %1523 = vst [vmem:[%s3 + $0x628] sm:$0xff] %v1264
    %1524 = vst [vmem:[%s3 + $0x630] sm:$0xff] %v1265
    %1525 = vst [vmem:[%s3 + $0x638] sm:$0xff] %v1266
    %1526 = vst [vmem:[%s3 + $0x640] sm:$0xff] %v1267
    %1527 = vst [vmem:[%s3 + $0x648] sm:$0xff] %v1268
    %1528 = vst [vmem:[%s3 + $0x650] sm:$0xff] %v1269
    %1529 = vst [vmem:[%s3 + $0x658] sm:$0xff] %v1270
    %1530 = vst [vmem:[%s3 + $0x660] sm:$0xff] %v1271
    %1531 = vst [vmem:[%s3 + $0x668] sm:$0xff] %v1272
    %1532 = vst [vmem:[%s3 + $0x670] sm:$0xff] %v1273
    %1533 = vst [vmem:[%s3 + $0x678] sm:$0xff] %v1274
    %1534 = vst [vmem:[%s3 + $0x680] sm:$0xff] %v1275
    %1535 = vst [vmem:[%s3 + $0x688] sm:$0xff] %v1276
    %1536 = vst [vmem:[%s3 + $0x690] sm:$0xff] %v1277
    %1537 = vst [vmem:[%s3 + $0x698] sm:$0xff] %v1278
    %1538 = vst [vmem:[%s3 + $0x6a0] sm:$0xff] %v1279
    %1539 = vst [vmem:[%s3 + $0x6a8] sm:$0xff] %v1280
    %1540 = vst [vmem:[%s3 + $0x6b0] sm:$0xff] %v1281
    %1541 = vst [vmem:[%s3 + $0x6b8] sm:$0xff] %v1282
    %1542 = vst [vmem:[%s3 + $0x6c0] sm:$0xff] %v1283
    %1543 = vst [vmem:[%s3 + $0x6c8] sm:$0xff] %v1284
    %1544 = vst [vmem:[%s3 + $0x6d0] sm:$0xff] %v1285
    %1545 = vst [vmem:[%s3 + $0x6d8] sm:$0xff] %v1286
    %1546 = vst [vmem:[%s3 + $0x6e0] sm:$0xff] %v1287
    %1547 = vst [vmem:[%s3 + $0x6e8] sm:$0xff] %v1288
    %1548 = vst [vmem:[%s3 + $0x6f0] sm:$0xff] %v1289
    %1549 = vst [vmem:[%s3 + $0x6f8] sm:$0xff] %v1290
    %1550 = vst [vmem:[%s3 + $0x700] sm:$0xff] %v1291
    %1551 = vst [vmem:[%s3 + $0x708] sm:$0xff] %v1292
    %1552 = vst [vmem:[%s3 + $0x710] sm:$0xff] %v1293
    %1553 = vst [vmem:[%s3 + $0x718] sm:$0xff] %v1294
    %1554 = vst [vmem:[%s3 + $0x720] sm:$0xff] %v1295
    %1555 = vst [vmem:[%s3 + $0x728] sm:$0xff] %v1296
    %1556 = vst [vmem:[%s3 + $0x730] sm:$0xff] %v1297
    %1557 = vst [vmem:[%s3 + $0x738] sm:$0xff] %v1298
    %1558 = vst [vmem:[%s3 + $0x740] sm:$0xff] %v1299
    %1559 = vst [vmem:[%s3 + $0x748] sm:$0xff] %v1300
    %1560 = vst [vmem:[%s3 + $0x750] sm:$0xff] %v1301
    %1561 = vst [vmem:[%s3 + $0x758] sm:$0xff] %v1302
    %1562 = vst [vmem:[%s3 + $0x760] sm:$0xff] %v1303
    %1563 = vst [vmem:[%s3 + $0x768] sm:$0xff] %v1304
    %1564 = vst [vmem:[%s3 + $0x770] sm:$0xff] %v1305
    %1565 = vst [vmem:[%s3 + $0x778] sm:$0xff] %v1306
    %1566 = vst [vmem:[%s3 + $0x780] sm:$0xff] %v1307
    %1567 = vst [vmem:[%s3 + $0x788] sm:$0xff] %v1308
    %1568 = vst [vmem:[%s3 + $0x790] sm:$0xff] %v1309
    %1569 = vst [vmem:[%s3 + $0x798] sm:$0xff] %v1310
    %1570 = vst [vmem:[%s3 + $0x7a0] sm:$0xff] %v1311
    %1571 = vst [vmem:[%s3 + $0x7a8] sm:$0xff] %v1312
    %1572 = vst [vmem:[%s3 + $0x7b0] sm:$0xff] %v1313
    %1573 = vst [vmem:[%s3 + $0x7b8] sm:$0xff] %v1314
    %1574 = vst [vmem:[%s3 + $0x7c0] sm:$0xff] %v1315
    %1575 = vst [vmem:[%s3 + $0x7c8] sm:$0xff] %v1316
    %1576 = vst [vmem:[%s3 + $0x7d0] sm:$0xff] %v1317
    %1577 = vst [vmem:[%s3 + $0x7d8] sm:$0xff] %v1318
    %1578 = vst [vmem:[%s3 + $0x7e0] sm:$0xff] %v1319
    %1579 = vst [vmem:[%s3 + $0x7e8] sm:$0xff] %v1320
    %1580 = vst [vmem:[%s3 + $0x7f0] sm:$0xff] %v1321
    %1581 = vst [vmem:[%s3 + $0x7f8] sm:$0xff] %v1322
    %1582 = vst [vmem:[%s3 + $0x800] sm:$0xff] %v1323
    %1583 = vst [vmem:[%s3 + $0x808] sm:$0xff] %v1324
    %1584 = vst [vmem:[%s3 + $0x810] sm:$0xff] %v1325
    // Predicated region
    $region18: #{step.2} parent=1 // pred_check
      _
    $region19: #{step.2} parent=1 // pred_check_branch
      %1586 = sbr.rel (0) target = $region21
    $region20: #{step.2} parent=1 // pred_region
      _
    $region21: #{step.2} parent=1 // pred_fallthru
      _
    // Predicated region
    $region22: #{step.2} parent=1 // pred_check
      _
    $region23: #{step.2} parent=1 // pred_check_branch
      %1588 = sbr.rel (0) target = $region25
    $region24: #{step.2} parent=1 // pred_region
      _
    $region25: #{step.2} parent=1 // pred_fallthru
      _
    %1589 = vsyncpa [#allocation3], 1

</llo_original>
